<compile_context>
chip_gen: v6e
topology: v6e:2x2x1
jax: 0.10.0
libtpu: 0.0.40
codegen_flags: <defaults>
</compile_context>

<pallas_src>
import functools
import math

import jax
import jax.numpy as jnp
from jax.experimental import pallas as pl
from jax.experimental.pallas import tpu as pltpu


def _attention_pool_kernel(x_ref, pos_ref, wqkv_ref, bqkv_ref, wkv_ref, bkv_ref,
                           wc_ref, bc_ref, segd_ref, segu_ref, o_ref, *,
                           num_heads, compute_dtype):
    B, L, C = x_ref.shape
    hd = C // num_heads
    scale = 1.0 / math.sqrt(hd)
    f32 = jnp.float32
    cdt = compute_dtype
    approx = cdt != jnp.float32   # EUP reciprocal is plenty for the bf16 path

    x = x_ref[...].astype(f32)             # (B, L, C)
    pos = pos_ref[...].astype(f32)         # (L+1, C)

    # cat([mean, x]) + positional embedding, mean token handled separately.
    mean = jnp.mean(x, axis=1)                       # (B, C)   f32 accumulation
    q_in = (mean + pos[0:1]).astype(cdt)             # (B, C)   mean token + pos[0]
    x_pos = (x + pos[1:][None, :, :]).astype(cdt)    # (B, L, C)
    x_flat = x_pos.reshape(B * L, C)                 # (B*L, C) minor dim preserved

    # --- Fused projections (weights pre-transposed in the wrapper) ----------
    # Mean token: one (B, C) x (C, 3C) matmul -> Q | Km | Vm.
    qkv_m = jnp.dot(q_in, wqkv_ref[...], preferred_element_type=f32) + bqkv_ref[...]
    Q = qkv_m[:, :C]                                  # (B, C)
    Km = qkv_m[:, C:2 * C]                            # (B, C)
    Vm = qkv_m[:, 2 * C:]                             # (B, C)
    # Spatial tokens: one (B*L, C) x (C, 2C) matmul -> Kx | Vx.
    kv_x = jnp.dot(x_flat, wkv_ref[...], preferred_element_type=f32) + bkv_ref[...]
    Kx = kv_x[:, :C].reshape(B, L, C)                 # (B, L, C)
    Vx = kv_x[:, C:].reshape(B, L, C)                 # (B, L, C)

    # --- Scores: single query row -> elementwise Q*K + per-head segment sum --
    # (seg_down (C,H) / seg_up (H,C) one-hot matrices are kernel inputs.)
    kq = Kx * Q[:, None, :]                           # (B, L, C) implicit broadcast
    s_x = (jnp.dot(kq.reshape(B * L, C).astype(cdt), segd_ref[...],
                   preferred_element_type=f32).reshape(B, L, num_heads) * scale)
    s_m = jnp.dot((Km * Q).astype(cdt), segd_ref[...],
                  preferred_element_type=f32) * scale                   # (B, H)

    # --- Stable softmax over the L+1 keys; normalization folded to the end ---
    m = jnp.maximum(jnp.max(s_x, axis=1), s_m)        # (B, H)
    e_x = jnp.exp(s_x - m[:, None, :])                # (B, L, H) unnormalized
    e_m = jnp.exp(s_m - m)                            # (B, H)
    denom = jnp.sum(e_x, axis=1) + e_m                # (B, H)
    inv = pl.reciprocal(denom, approx=approx)         # (B, H)

    # attn = P @ V on the VPU: broadcast the UNNORMALIZED per-head weights
    # across their hd lanes, multiply by V, reduce over keys, then apply the
    # 1/denom normalization once on the (B, C) result.
    e_x_full = jnp.dot(e_x.reshape(B * L, num_heads).astype(cdt), segu_ref[...],
                       preferred_element_type=f32).reshape(B, L, C)     # (B, L, C)
    wsum = jnp.sum(e_x_full * Vx, axis=1)                               # (B, C)
    e_m_full = jnp.dot(e_m.astype(cdt), segu_ref[...],
                       preferred_element_type=f32)                      # (B, C)
    inv_full = jnp.dot(inv.astype(cdt), segu_ref[...],
                       preferred_element_type=f32)                      # (B, C)
    attn = (wsum + e_m_full * Vm) * inv_full                            # (B, C)

    # Output projection -> lane-dense padded (B, out_pad) slab.
    out = jnp.dot(attn.astype(cdt), wc_ref[...], preferred_element_type=f32) + bc_ref[...]
    o_ref[...] = out.astype(o_ref.dtype)


def attention_pool(x, pos, wq, bq, wk, bk, wv, bv, wc, bc, *, num_heads,
                   batch_tile=8, compute_dtype=jnp.bfloat16,
                   vmem_limit_bytes=48 * 1024 * 1024):
    """x: (N, L, C) NLC input.  Weights in PyTorch Linear layout, biases 1-D."""
    N, L, C = x.shape
    out_dim = wc.shape[0]
    H = num_heads
    assert C % H == 0
    hd = C // H
    orig_dtype = x.dtype

    bt = batch_tile                     # keep a multiple of 8 (sublane-dense out)
    n_pad = pl.cdiv(N, bt) * bt
    if n_pad != N:                      # pad batch; padded rows are sliced off
        x = jnp.pad(x, ((0, n_pad - N), (0, 0), (0, 0)))
    x = x.astype(compute_dtype)         # halves x-tile DMA/VMEM in the bf16 path
    pos_c = pos.astype(compute_dtype)

    # Fused, pre-transposed projection weights (no in-kernel .T, one MXU
    # weight-load per token group).
    wqkv_t = jnp.concatenate([wq.T, wk.T, wv.T], axis=1).astype(compute_dtype)   # (C, 3C)
    bqkv = jnp.concatenate([bq, bk, bv]).reshape(1, 3 * C).astype(jnp.float32)
    wkv_t = jnp.concatenate([wk.T, wv.T], axis=1).astype(compute_dtype)          # (C, 2C)
    bkv = jnp.concatenate([bk, bv]).reshape(1, 2 * C).astype(jnp.float32)

    # Output projection padded to a lane-dense multiple of 128 columns
    # (unmasked vst on the output slab); pad is sliced off after the call.
    out_pad = pl.cdiv(out_dim, 128) * 128
    wc_t = jnp.pad(wc.T.astype(compute_dtype), ((0, 0), (0, out_pad - out_dim)))
    bc_p = jnp.pad(bc, (0, out_pad - out_dim)).reshape(1, out_pad).astype(jnp.float32)

    # Head-segment one-hot matrices, built once here (constant index_map ->
    # fetched a single time, never rebuilt inside the sequential grid loop).
    seg_down = jnp.kron(jnp.eye(H), jnp.ones((hd, 1))).astype(compute_dtype)     # (C, H)
    seg_up = jnp.kron(jnp.eye(H), jnp.ones((1, hd))).astype(compute_dtype)       # (H, C)

    kernel = functools.partial(_attention_pool_kernel, num_heads=num_heads,
                               compute_dtype=compute_dtype)
    out = pl.pallas_call(
        kernel,
        out_shape=jax.ShapeDtypeStruct((n_pad, out_pad), orig_dtype),
        grid_spec=pltpu.PrefetchScalarGridSpec(
            num_scalar_prefetch=0,
            grid=(n_pad // bt,),
            in_specs=[
                pl.BlockSpec((bt, L, C), lambda n: (n, 0, 0)),       # x tile
                pl.BlockSpec((L + 1, C), lambda n: (0, 0)),          # pos emb
                pl.BlockSpec((C, 3 * C), lambda n: (0, 0)),          # [Wq|Wk|Wv]^T
                pl.BlockSpec((1, 3 * C), lambda n: (0, 0)),          # [bq|bk|bv]
                pl.BlockSpec((C, 2 * C), lambda n: (0, 0)),          # [Wk|Wv]^T
                pl.BlockSpec((1, 2 * C), lambda n: (0, 0)),          # [bk|bv]
                pl.BlockSpec((C, out_pad), lambda n: (0, 0)),        # Wc^T (padded)
                pl.BlockSpec((1, out_pad), lambda n: (0, 0)),        # bc (padded)
                pl.BlockSpec((C, H), lambda n: (0, 0)),              # seg_down
                pl.BlockSpec((H, C), lambda n: (0, 0)),              # seg_up
            ],
            out_specs=pl.BlockSpec((bt, out_pad), lambda n: (n, 0)),
        ),
        compiler_params=pltpu.CompilerParams(
            dimension_semantics=("parallel",),
            vmem_limit_bytes=vmem_limit_bytes),
    )(x, pos_c, wqkv_t, bqkv, wkv_t, bkv, wc_t, bc_p, seg_down, seg_up)
    return out[:N, :out_dim]


def reference(x, pos, wq, bq, wk, bk, wv, bv, wc, bc, *, num_heads):
    """Pure-JAX transcription of the PyTorch forward (for verification)."""
    N, L, C = x.shape
    hd = C // num_heads
    xs = jnp.transpose(x, (1, 0, 2))                                  # (L, N, C)
    xs = jnp.concatenate([xs.mean(0, keepdims=True), xs], axis=0)     # (L+1, N, C)
    xs = xs + pos[:, None, :]
    q = xs[0:1] @ wq.T + bq
    k = xs @ wk.T + bk
    v = xs @ wv.T + bv
    qh = q.reshape(1, N, num_heads, hd)
    kh = k.reshape(L + 1, N, num_heads, hd)
    vh = v.reshape(L + 1, N, num_heads, hd)
    s = jnp.einsum('qnhd,knhd->nhqk', qh, kh) / math.sqrt(hd)
    p = jax.nn.softmax(s, axis=-1)
    o = jnp.einsum('nhqk,knhd->qnhd', p, vh).reshape(1, N, C)
    return (o @ wc.T + bc)[0]                                         # (N, out_dim)


if __name__ == "__main__":
    # Small shapes consistent with the module; batch=10 exercises both the
    # batch-tiling (grid of 2, keeps both v7x TensorCores busy) and pad/slice.
    batch, spacial_dim, embed_dim, num_heads, output_dim = 10, 8, 32, 4, 16
    L, C = spacial_dim, embed_dim

    key = jax.random.PRNGKey(0)
    ks = jax.random.split(key, 10)
    x = jax.random.normal(ks[0], (batch, L, C), jnp.float32)

    # Deterministic synthetic parameters (shapes from __init__).
    pos = jax.random.normal(ks[1], (L + 1, C), jnp.float32) / math.sqrt(C)
    wq = jax.random.normal(ks[2], (C, C), jnp.float32) * 0.05
    wk = jax.random.normal(ks[3], (C, C), jnp.float32) * 0.05
    wv = jax.random.normal(ks[4], (C, C), jnp.float32) * 0.05
    wc = jax.random.normal(ks[5], (output_dim, C), jnp.float32) * 0.05
    bq = jax.random.normal(ks[6], (C,), jnp.float32) * 0.05
    bk = jax.random.normal(ks[7], (C,), jnp.float32) * 0.05
    bv = jax.random.normal(ks[8], (C,), jnp.float32) * 0.05
    bc = jax.random.normal(ks[9], (output_dim,), jnp.float32) * 0.05

    args = (x, pos, wq, bq, wk, bk, wv, bv, wc, bc)

    # Default fast path: bf16 MXU operands, f32 accumulation.
    out_bf16 = attention_pool(*args, num_heads=num_heads, batch_tile=8)
    out_bf16 = jax.block_until_ready(out_bf16)

    # Exact-f32 path (same kernel, compute_dtype=f32) for a tight check.
    out_f32 = attention_pool(*args, num_heads=num_heads, batch_tile=8,
                             compute_dtype=jnp.float32)
    out_f32 = jax.block_until_ready(out_f32)

    ref = reference(*args, num_heads=num_heads)
    assert out_bf16.shape == (batch, output_dim)
    assert out_f32.shape == (batch, output_dim)
    assert jnp.allclose(out_f32, ref, atol=5e-5, rtol=5e-5), (out_f32, ref)
    assert jnp.allclose(out_bf16, ref, atol=2e-2, rtol=2e-2), (out_bf16, ref)
    print("KERNEL_OK")
</pallas_src>

<mosaic_0001>
module attributes {stable_mosaic.version = 11 : i64} {
  func.func @_attention_pool_kernel(%arg0: i32, %arg1: memref<8x8x32xbf16, #tpu.memory_space<vmem>>, %arg2: memref<9x32xbf16, #tpu.memory_space<vmem>>, %arg3: memref<32x96xbf16, #tpu.memory_space<vmem>>, %arg4: memref<1x96xf32, #tpu.memory_space<vmem>>, %arg5: memref<32x64xbf16, #tpu.memory_space<vmem>>, %arg6: memref<1x64xf32, #tpu.memory_space<vmem>>, %arg7: memref<32x128xbf16, #tpu.memory_space<vmem>>, %arg8: memref<1x128xf32, #tpu.memory_space<vmem>>, %arg9: memref<32x4xbf16, #tpu.memory_space<vmem>>, %arg10: memref<4x32xbf16, #tpu.memory_space<vmem>>, %arg11: memref<8x128xf32, #tpu.memory_space<vmem>>) attributes {dimension_semantics = [#tpu.dimension_semantics<parallel>], iteration_bounds = array<i64: 2>, scalar_prefetch = 0 : i64, scratch_operands = 0 : i64, tpu.core_type = #tpu.core_type<tc>, window_params = [{transform_indices = @transform_0, window_bounds = array<i64: 8, 8, 32>}, {pipeline_mode = #tpu.pipeline_mode<synchronous>, transform_indices = @transform_1, window_bounds = array<i64: 9, 32>}, {pipeline_mode = #tpu.pipeline_mode<synchronous>, transform_indices = @transform_2, window_bounds = array<i64: 32, 96>}, {pipeline_mode = #tpu.pipeline_mode<synchronous>, transform_indices = @transform_3, window_bounds = array<i64: 1, 96>}, {pipeline_mode = #tpu.pipeline_mode<synchronous>, transform_indices = @transform_4, window_bounds = array<i64: 32, 64>}, {pipeline_mode = #tpu.pipeline_mode<synchronous>, transform_indices = @transform_5, window_bounds = array<i64: 1, 64>}, {pipeline_mode = #tpu.pipeline_mode<synchronous>, transform_indices = @transform_6, window_bounds = array<i64: 32, 128>}, {pipeline_mode = #tpu.pipeline_mode<synchronous>, transform_indices = @transform_7, window_bounds = array<i64: 1, 128>}, {pipeline_mode = #tpu.pipeline_mode<synchronous>, transform_indices = @transform_8, window_bounds = array<i64: 32, 4>}, {pipeline_mode = #tpu.pipeline_mode<synchronous>, transform_indices = @transform_9, window_bounds = array<i64: 4, 32>}, {transform_indices = @transform_10, window_bounds = array<i64: 8, 128>}]} {
    %c0 = arith.constant 0 : index
    %c0_0 = arith.constant 0 : index
    %c0_1 = arith.constant 0 : index
    %0 = vector.load %arg1[%c0, %c0_0, %c0_1] : memref<8x8x32xbf16, #tpu.memory_space<vmem>>, vector<8x8x32xbf16>
    %1 = arith.extf %0 : vector<8x8x32xbf16> to vector<8x8x32xf32>
    %c0_2 = arith.constant 0 : index
    %c0_3 = arith.constant 0 : index
    %2 = vector.load %arg2[%c0_2, %c0_3] : memref<9x32xbf16, #tpu.memory_space<vmem>>, vector<9x32xbf16>
    %3 = arith.extf %2 : vector<9x32xbf16> to vector<9x32xf32>
    %cst = arith.constant dense<0.000000e+00> : vector<8x32xf32>
    %4 = vector.multi_reduction <add>, %1, %cst [1] : vector<8x8x32xf32> to vector<8x32xf32>
    %cst_4 = arith.constant 8.000000e+00 : f32
    %5 = vector.broadcast %cst_4 : f32 to vector<8x32xf32>
    %6 = arith.divf %4, %5 : vector<8x32xf32>
    %7 = vector.extract_strided_slice %3 {offsets = [0, 0], sizes = [1, 32], strides = [1, 1]} : vector<9x32xf32> to vector<1x32xf32>
    %8 = vector.broadcast %7 : vector<1x32xf32> to vector<8x32xf32>
    %9 = arith.addf %6, %8 : vector<8x32xf32>
    %10 = arith.truncf %9 : vector<8x32xf32> to vector<8x32xbf16>
    %11 = vector.extract_strided_slice %3 {offsets = [1, 0], sizes = [8, 32], strides = [1, 1]} : vector<9x32xf32> to vector<8x32xf32>
    %12 = vector.shape_cast %11 : vector<8x32xf32> to vector<1x8x32xf32>
    %13 = vector.broadcast %12 : vector<1x8x32xf32> to vector<8x8x32xf32>
    %14 = arith.addf %1, %13 : vector<8x8x32xf32>
    %15 = arith.truncf %14 : vector<8x8x32xf32> to vector<8x8x32xbf16>
    %16 = vector.shape_cast %15 : vector<8x8x32xbf16> to vector<64x32xbf16>
    %c0_5 = arith.constant 0 : index
    %c0_6 = arith.constant 0 : index
    %17 = vector.load %arg3[%c0_5, %c0_6] : memref<32x96xbf16, #tpu.memory_space<vmem>>, vector<32x96xbf16>
    %cst_7 = arith.constant dense<0.000000e+00> : vector<8x96xf32>
    %18 = tpu.matmul %10, %17, %cst_7 {dimension_numbers = #tpu.dot_dimension_numbers<[1], [0], [0], [1], [0, 0, 1, 1], [], []>} : vector<8x32xbf16>, vector<32x96xbf16>, vector<8x96xf32> -> vector<8x96xf32>
    %c0_8 = arith.constant 0 : index
    %c0_9 = arith.constant 0 : index
    %19 = vector.load %arg4[%c0_8, %c0_9] : memref<1x96xf32, #tpu.memory_space<vmem>>, vector<1x96xf32>
    %20 = vector.broadcast %19 : vector<1x96xf32> to vector<8x96xf32>
    %21 = arith.addf %18, %20 : vector<8x96xf32>
    %22 = vector.extract_strided_slice %21 {offsets = [0, 0], sizes = [8, 32], strides = [1, 1]} : vector<8x96xf32> to vector<8x32xf32>
    %23 = vector.extract_strided_slice %21 {offsets = [0, 32], sizes = [8, 32], strides = [1, 1]} : vector<8x96xf32> to vector<8x32xf32>
    %24 = vector.extract_strided_slice %21 {offsets = [0, 64], sizes = [8, 32], strides = [1, 1]} : vector<8x96xf32> to vector<8x32xf32>
    %c0_10 = arith.constant 0 : index
    %c0_11 = arith.constant 0 : index
    %25 = vector.load %arg5[%c0_10, %c0_11] : memref<32x64xbf16, #tpu.memory_space<vmem>>, vector<32x64xbf16>
    %cst_12 = arith.constant dense<0.000000e+00> : vector<64x64xf32>
    %26 = tpu.matmul %16, %25, %cst_12 {dimension_numbers = #tpu.dot_dimension_numbers<[1], [0], [0], [1], [0, 0, 1, 1], [], []>} : vector<64x32xbf16>, vector<32x64xbf16>, vector<64x64xf32> -> vector<64x64xf32>
    %c0_13 = arith.constant 0 : index
    %c0_14 = arith.constant 0 : index
    %27 = vector.load %arg6[%c0_13, %c0_14] : memref<1x64xf32, #tpu.memory_space<vmem>>, vector<1x64xf32>
    %28 = vector.broadcast %27 : vector<1x64xf32> to vector<64x64xf32>
    %29 = arith.addf %26, %28 : vector<64x64xf32>
    %30 = vector.extract_strided_slice %29 {offsets = [0, 0], sizes = [64, 32], strides = [1, 1]} : vector<64x64xf32> to vector<64x32xf32>
    %31 = vector.shape_cast %30 : vector<64x32xf32> to vector<8x8x32xf32>
    %32 = vector.extract_strided_slice %29 {offsets = [0, 32], sizes = [64, 32], strides = [1, 1]} : vector<64x64xf32> to vector<64x32xf32>
    %33 = vector.shape_cast %32 : vector<64x32xf32> to vector<8x8x32xf32>
    %34 = vector.shape_cast %22 : vector<8x32xf32> to vector<8x1x32xf32>
    %35 = vector.broadcast %34 : vector<8x1x32xf32> to vector<8x8x32xf32>
    %36 = arith.mulf %31, %35 : vector<8x8x32xf32>
    %37 = vector.shape_cast %36 : vector<8x8x32xf32> to vector<64x32xf32>
    %38 = arith.truncf %37 : vector<64x32xf32> to vector<64x32xbf16>
    %c0_15 = arith.constant 0 : index
    %c0_16 = arith.constant 0 : index
    %39 = vector.load %arg9[%c0_15, %c0_16] : memref<32x4xbf16, #tpu.memory_space<vmem>>, vector<32x4xbf16>
    %cst_17 = arith.constant dense<0.000000e+00> : vector<64x4xf32>
    %40 = tpu.matmul %38, %39, %cst_17 {dimension_numbers = #tpu.dot_dimension_numbers<[1], [0], [0], [1], [0, 0, 1, 1], [], []>} : vector<64x32xbf16>, vector<32x4xbf16>, vector<64x4xf32> -> vector<64x4xf32>
    %41 = vector.shape_cast %40 : vector<64x4xf32> to vector<8x8x4xf32>
    %cst_18 = arith.constant 0.353553385 : f32
    %42 = vector.broadcast %cst_18 : f32 to vector<8x8x4xf32>
    %43 = arith.mulf %41, %42 : vector<8x8x4xf32>
    %44 = arith.mulf %23, %22 : vector<8x32xf32>
    %45 = arith.truncf %44 : vector<8x32xf32> to vector<8x32xbf16>
    %c0_19 = arith.constant 0 : index
    %c0_20 = arith.constant 0 : index
    %46 = vector.load %arg9[%c0_19, %c0_20] : memref<32x4xbf16, #tpu.memory_space<vmem>>, vector<32x4xbf16>
    %cst_21 = arith.constant dense<0.000000e+00> : vector<8x4xf32>
    %47 = tpu.matmul %45, %46, %cst_21 {dimension_numbers = #tpu.dot_dimension_numbers<[1], [0], [0], [1], [0, 0, 1, 1], [], []>} : vector<8x32xbf16>, vector<32x4xbf16>, vector<8x4xf32> -> vector<8x4xf32>
    %cst_22 = arith.constant 0.353553385 : f32
    %48 = vector.broadcast %cst_22 : f32 to vector<8x4xf32>
    %49 = arith.mulf %47, %48 : vector<8x4xf32>
    %cst_23 = arith.constant dense<0xFF800000> : vector<8x4xf32>
    %50 = vector.multi_reduction <maximumf>, %43, %cst_23 [1] : vector<8x8x4xf32> to vector<8x4xf32>
    %51 = arith.maximumf %50, %49 : vector<8x4xf32>
    %52 = vector.shape_cast %51 : vector<8x4xf32> to vector<8x1x4xf32>
    %53 = vector.broadcast %52 : vector<8x1x4xf32> to vector<8x8x4xf32>
    %54 = arith.subf %43, %53 : vector<8x8x4xf32>
    %55 = math.exp %54 : vector<8x8x4xf32>
    %56 = arith.subf %49, %51 : vector<8x4xf32>
    %57 = math.exp %56 : vector<8x4xf32>
    %cst_24 = arith.constant dense<0.000000e+00> : vector<8x4xf32>
    %58 = vector.multi_reduction <add>, %55, %cst_24 [1] : vector<8x8x4xf32> to vector<8x4xf32>
    %59 = arith.addf %58, %57 : vector<8x4xf32>
    %60 = tpu.reciprocal %59 {approx = true} : vector<8x4xf32> -> vector<8x4xf32>
    %61 = vector.shape_cast %55 : vector<8x8x4xf32> to vector<64x4xf32>
    %62 = arith.truncf %61 : vector<64x4xf32> to vector<64x4xbf16>
    %c0_25 = arith.constant 0 : index
    %c0_26 = arith.constant 0 : index
    %63 = vector.load %arg10[%c0_25, %c0_26] : memref<4x32xbf16, #tpu.memory_space<vmem>>, vector<4x32xbf16>
    %cst_27 = arith.constant dense<0.000000e+00> : vector<64x32xf32>
    %64 = tpu.matmul %62, %63, %cst_27 {dimension_numbers = #tpu.dot_dimension_numbers<[1], [0], [0], [1], [0, 0, 1, 1], [], []>} : vector<64x4xbf16>, vector<4x32xbf16>, vector<64x32xf32> -> vector<64x32xf32>
    %65 = vector.shape_cast %64 : vector<64x32xf32> to vector<8x8x32xf32>
    %66 = arith.mulf %65, %33 : vector<8x8x32xf32>
    %cst_28 = arith.constant dense<0.000000e+00> : vector<8x32xf32>
    %67 = vector.multi_reduction <add>, %66, %cst_28 [1] : vector<8x8x32xf32> to vector<8x32xf32>
    %68 = arith.truncf %57 : vector<8x4xf32> to vector<8x4xbf16>
    %c0_29 = arith.constant 0 : index
    %c0_30 = arith.constant 0 : index
    %69 = vector.load %arg10[%c0_29, %c0_30] : memref<4x32xbf16, #tpu.memory_space<vmem>>, vector<4x32xbf16>
    %cst_31 = arith.constant dense<0.000000e+00> : vector<8x32xf32>
    %70 = tpu.matmul %68, %69, %cst_31 {dimension_numbers = #tpu.dot_dimension_numbers<[1], [0], [0], [1], [0, 0, 1, 1], [], []>} : vector<8x4xbf16>, vector<4x32xbf16>, vector<8x32xf32> -> vector<8x32xf32>
    %71 = arith.truncf %60 : vector<8x4xf32> to vector<8x4xbf16>
    %c0_32 = arith.constant 0 : index
    %c0_33 = arith.constant 0 : index
    %72 = vector.load %arg10[%c0_32, %c0_33] : memref<4x32xbf16, #tpu.memory_space<vmem>>, vector<4x32xbf16>
    %cst_34 = arith.constant dense<0.000000e+00> : vector<8x32xf32>
    %73 = tpu.matmul %71, %72, %cst_34 {dimension_numbers = #tpu.dot_dimension_numbers<[1], [0], [0], [1], [0, 0, 1, 1], [], []>} : vector<8x4xbf16>, vector<4x32xbf16>, vector<8x32xf32> -> vector<8x32xf32>
    %74 = arith.mulf %70, %24 : vector<8x32xf32>
    %75 = arith.addf %67, %74 : vector<8x32xf32>
    %76 = arith.mulf %75, %73 : vector<8x32xf32>
    %77 = arith.truncf %76 : vector<8x32xf32> to vector<8x32xbf16>
    %c0_35 = arith.constant 0 : index
    %c0_36 = arith.constant 0 : index
    %78 = vector.load %arg7[%c0_35, %c0_36] : memref<32x128xbf16, #tpu.memory_space<vmem>>, vector<32x128xbf16>
    %cst_37 = arith.constant dense<0.000000e+00> : vector<8x128xf32>
    %79 = tpu.matmul %77, %78, %cst_37 {dimension_numbers = #tpu.dot_dimension_numbers<[1], [0], [0], [1], [0, 0, 1, 1], [], []>} : vector<8x32xbf16>, vector<32x128xbf16>, vector<8x128xf32> -> vector<8x128xf32>
    %c0_38 = arith.constant 0 : index
    %c0_39 = arith.constant 0 : index
    %80 = vector.load %arg8[%c0_38, %c0_39] : memref<1x128xf32, #tpu.memory_space<vmem>>, vector<1x128xf32>
    %81 = vector.broadcast %80 : vector<1x128xf32> to vector<8x128xf32>
    %82 = arith.addf %79, %81 : vector<8x128xf32>
    %c0_40 = arith.constant 0 : index
    %c0_41 = arith.constant 0 : index
    %83 = vector.load %arg11[%c0_40, %c0_41] : memref<8x128xf32, #tpu.memory_space<vmem>>, vector<8x128xf32>
    tpu.vector_store %arg11[%c0_40, %c0_41], %82 {strides = array<i32>} : memref<8x128xf32, #tpu.memory_space<vmem>>, vector<8x128xf32>,
    return
  }
  func.func @transform_0(%arg0: i32) -> (i32, i32, i32) {
    %c0_i32 = arith.constant 0 : i32
    %c0_i32_0 = arith.constant 0 : i32
    %c0_i32_1 = arith.constant 0 : i32
    return %arg0, %c0_i32, %c0_i32_0 : i32, i32, i32
  }
  func.func @transform_1(%arg0: i32) -> (i32, i32) {
    %c0_i32 = arith.constant 0 : i32
    %c0_i32_0 = arith.constant 0 : i32
    %c0_i32_1 = arith.constant 0 : i32
    return %c0_i32, %c0_i32_0 : i32, i32
  }
  func.func @transform_2(%arg0: i32) -> (i32, i32) {
    %c0_i32 = arith.constant 0 : i32
    %c0_i32_0 = arith.constant 0 : i32
    %c0_i32_1 = arith.constant 0 : i32
    return %c0_i32, %c0_i32_0 : i32, i32
  }
  func.func @transform_3(%arg0: i32) -> (i32, i32) {
    %c0_i32 = arith.constant 0 : i32
    %c0_i32_0 = arith.constant 0 : i32
    %c0_i32_1 = arith.constant 0 : i32
    return %c0_i32, %c0_i32_0 : i32, i32
  }
  func.func @transform_4(%arg0: i32) -> (i32, i32) {
    %c0_i32 = arith.constant 0 : i32
    %c0_i32_0 = arith.constant 0 : i32
    %c0_i32_1 = arith.constant 0 : i32
    return %c0_i32, %c0_i32_0 : i32, i32
  }
  func.func @transform_5(%arg0: i32) -> (i32, i32) {
    %c0_i32 = arith.constant 0 : i32
    %c0_i32_0 = arith.constant 0 : i32
    %c0_i32_1 = arith.constant 0 : i32
    return %c0_i32, %c0_i32_0 : i32, i32
  }
  func.func @transform_6(%arg0: i32) -> (i32, i32) {
    %c0_i32 = arith.constant 0 : i32
    %c0_i32_0 = arith.constant 0 : i32
    %c0_i32_1 = arith.constant 0 : i32
    return %c0_i32, %c0_i32_0 : i32, i32
  }
  func.func @transform_7(%arg0: i32) -> (i32, i32) {
    %c0_i32 = arith.constant 0 : i32
    %c0_i32_0 = arith.constant 0 : i32
    %c0_i32_1 = arith.constant 0 : i32
    return %c0_i32, %c0_i32_0 : i32, i32
  }
  func.func @transform_8(%arg0: i32) -> (i32, i32) {
    %c0_i32 = arith.constant 0 : i32
    %c0_i32_0 = arith.constant 0 : i32
    %c0_i32_1 = arith.constant 0 : i32
    return %c0_i32, %c0_i32_0 : i32, i32
  }
  func.func @transform_9(%arg0: i32) -> (i32, i32) {
    %c0_i32 = arith.constant 0 : i32
    %c0_i32_0 = arith.constant 0 : i32
    %c0_i32_1 = arith.constant 0 : i32
    return %c0_i32, %c0_i32_0 : i32, i32
  }
  func.func @transform_10(%arg0: i32) -> (i32, i32) {
    %c0_i32 = arith.constant 0 : i32
    %c0_i32_0 = arith.constant 0 : i32
    return %arg0, %c0_i32 : i32, i32
  }
}

</mosaic_0001>

<llo_original>
// kernel: tpu_custom_call.1
$region0: #{tpu_custom_call.1}
  #allocation0 [shape = 'u32[]', space=smem, size = 0x4, offset = 0x4, fixed_abs, tag = 'smem constant byte address 0x4 - core index']
  #allocation1 [shape = 'u32[144,128]{1,0:T(1,128)}', space=vmem, size = 0x12000, scoped, tag = 'internal scratch']
  %s0 = inlined_call_operand.hbm [shape: bf16[16,8,32], index: 0, kind: input, shape index: {}]
  %s1 = inlined_call_operand.hbm [shape: bf16[9,32], index: 1, kind: input, shape index: {}]
  %s2 = inlined_call_operand.vmem [shape: bf16[32,96], index: 2, kind: input, shape index: {}]
  %s3 = inlined_call_operand.vmem [shape: f32[1,96], index: 3, kind: input, shape index: {}]
  %s4 = inlined_call_operand.hbm [shape: bf16[32,64], index: 4, kind: input, shape index: {}]
  %s5 = inlined_call_operand.vmem [shape: f32[1,64], index: 5, kind: input, shape index: {}]
  %s6 = inlined_call_operand.hbm [shape: bf16[32,128], index: 6, kind: input, shape index: {}]
  %s7 = inlined_call_operand.vmem [shape: f32[1,128], index: 7, kind: input, shape index: {}]
  %s8 = inlined_call_operand.vmem [shape: bf16[32,4], index: 8, kind: input, shape index: {}]
  %s9 = inlined_call_operand.vmem [shape: bf16[4,32], index: 9, kind: input, shape index: {}]
  %s10 = inlined_call_operand.hbm [shape: f32[16,128], index: 10, kind: output, shape index: {}]
  %s11 = sld [smem:[#allocation0]]
  $region89: #{tpu_custom_call.1} parent=0
    _
  %s13 = ssub.s32 1, %s11
  %s14 = scalar_select 0, %s13, %s11
  $region1: #{tpu_custom_call.1} parent=0
    #allocation2 [shape = 'u8[32768]{0}', space=vmem, size = 0x8000, scoped, tag = 'input window, operand 0']
    #allocation3 [shape = 's32[2]{0}', space=sflag, size = 0x8, scoped, tag = 'scoped memory for tpu_custom_call.1']
    #allocation4 [shape = 's32[2]{0}', space=sflag, size = 0x8, scoped, tag = 'scoped memory for tpu_custom_call.1']
    #allocation5 [shape = 'u8[4096]{0}', space=vmem, size = 0x1000, scoped, tag = 'input window, operand 1, single buffered']
    #allocation6 [shape = 's32[1]{0}', space=sflag, size = 0x4, scoped, tag = 'scoped memory for tpu_custom_call.1']
    #allocation7 [shape = 'u8[8192]{0}', space=vmem, size = 0x2000, scoped, tag = 'input window, operand 4, single buffered']
    #allocation8 [shape = 'u8[8192]{0}', space=vmem, size = 0x2000, scoped, tag = 'input window, operand 6, single buffered']
    #allocation9 [shape = 's32[1]{0}', space=sflag, size = 0x4, scoped, tag = 'scoped memory for tpu_custom_call.1']
    #allocation10 [shape = 'u8[8192]{0}', space=vmem, size = 0x2000, scoped, tag = 'output window, operand 0']
    %15 = vsyncpa [#allocation3], 0
    %s16 = scalar_lea.sflag [#allocation3], 1
    %17 = vsyncpa %s16, 0
    %18 = vsyncpa [#allocation6], 0
    %19 = vsyncpa [#allocation9], 0
    %20 = vsyncpa [#allocation4], 0
    %s21 = scalar_lea.sflag [#allocation4], 1
    %22 = vsyncpa %s21, 0
    loop: start=0, step=1, limit=4
    $region2: #{tpu_custom_call.1} parent=1 // loop_pre_header
      _
    $region3: #{tpu_custom_call.1} parent=1 // loop_header
      %s24 = sphi 0, %s28
      %p25 = scmp.ge.s32.totalorder %s24, 4
      %s34 = sphi 0, %s36
      %s37 = sphi 0, %s34
      %s38 = sphi 0, %s37
      %s54 = sphi 0, %s38
      %s58 = sphi 0, %s58
      %s60 = sphi 0, %s58
      %s61 = sphi 0, %s60
      %s75 = sphi 0, %s61
      %s79 = sphi 0, %s79
      %s81 = sphi 0, %s79
      %s82 = sphi 0, %s81
      %s96 = sphi 0, %s82
      %s100 = sphi 0, %s100
      %s102 = sphi 0, %s100
      %s103 = sphi 0, %s102
      %s117 = sphi 0, %s103
      %s121 = sphi 0, %s121
      %s123 = sphi 0, %s121
      %s124 = sphi 0, %s123
      %s138 = sphi 0, %s124
      %s142 = sphi 0, %s142
      %s144 = sphi 0, %s142
      %s145 = sphi 0, %s144
      %s159 = sphi 0, %s145
      %s163 = sphi 0, %s163
      %s165 = sphi 0, %s163
      %s166 = sphi 0, %s165
      %s180 = sphi 0, %s166
      %s184 = sphi 0, %s184
      %s186 = sphi 0, %s184
      %s187 = sphi 0, %s186
      %s201 = sphi 0, %s187
      %s205 = sphi 0, %s205
      %s207 = sphi 0, %s205
      %s208 = sphi 0, %s207
      %s222 = sphi 0, %s208
      %s226 = sphi 0, %s226
      %s228 = sphi 0, %s226
      %s229 = sphi 0, %s228
      %s243 = sphi 0, %s229
      %s249 = sphi 0, %s251
      %s252 = sphi 0, %s249
      %s253 = sphi 0, %s252
      %s269 = sphi 0, %s253
    $region4: #{tpu_custom_call.1} parent=1 // loop_header_branch
      %27 = sbr.rel (%p25) target = $region8
    $region5: #{tpu_custom_call.1} parent=1 // loop_body
      %s29 = ssub.s32 %s24, 1
      %s30 = ssub.s32 %s24, 2
      %s31 = sadd.s32 %s24, 1
      %s32 = ssub.s32 %s24, %s31
      %p33 = scmp.eq.s32.totalorder %s32, 0
      %s35 = sadd.s32 %s34, 1
      %s36 = scalar_select %p33, %s34, %s35
      %p39 = pneg %p33
      %p40 = scmp.eq.s32.totalorder %s24, 1
      %p41 = por %p39, %p40
      %p42 = scmp.ne.s32.totalorder %s34, %s37
      %p43 = scmp.eq.s32.totalorder %s24, 0
      %p44 = por %p42, %p43
      %p45 = scmp.ne.s32.totalorder %s34, %s37
      %p46 = scmp.eq.s32.totalorder %s29, 1
      %p47 = por %p45, %p46
      %p48 = scmp.ne.s32.totalorder %s37, %s38
      %p49 = scmp.eq.s32.totalorder %s29, 0
      %p50 = por %p48, %p49
      %p51 = scmp.ne.s32.totalorder %s37, %s38
      %p52 = scmp.eq.s32.totalorder %s30, 1
      %p53 = por %p51, %p52
      %p55 = scmp.ne.s32.totalorder %s38, %s54
      %p56 = scmp.eq.s32.totalorder %s30, 0
      %p57 = por %p55, %p56
      %s59 = sadd.s32 %s58, 1
      %p62 = scmp.eq.s32.totalorder %s24, 1
      %p63 = scmp.ne.s32.totalorder %s58, %s60
      %p64 = scmp.eq.s32.totalorder %s24, 0
      %p65 = por %p63, %p64
      %p66 = scmp.ne.s32.totalorder %s58, %s60
      %p67 = scmp.eq.s32.totalorder %s29, 1
      %p68 = por %p66, %p67
      %p69 = scmp.ne.s32.totalorder %s60, %s61
      %p70 = scmp.eq.s32.totalorder %s29, 0
      %p71 = por %p69, %p70
      %p72 = scmp.ne.s32.totalorder %s60, %s61
      %p73 = scmp.eq.s32.totalorder %s30, 1
      %p74 = por %p72, %p73
      %p76 = scmp.ne.s32.totalorder %s61, %s75
      %p77 = scmp.eq.s32.totalorder %s30, 0
      %p78 = por %p76, %p77
      %s80 = sadd.s32 %s79, 1
      %p83 = scmp.eq.s32.totalorder %s24, 1
      %p84 = scmp.ne.s32.totalorder %s79, %s81
      %p85 = scmp.eq.s32.totalorder %s24, 0
      %p86 = por %p84, %p85
      %p87 = scmp.ne.s32.totalorder %s79, %s81
      %p88 = scmp.eq.s32.totalorder %s29, 1
      %p89 = por %p87, %p88
      %p90 = scmp.ne.s32.totalorder %s81, %s82
      %p91 = scmp.eq.s32.totalorder %s29, 0
      %p92 = por %p90, %p91
      %p93 = scmp.ne.s32.totalorder %s81, %s82
      %p94 = scmp.eq.s32.totalorder %s30, 1
      %p95 = por %p93, %p94
      %p97 = scmp.ne.s32.totalorder %s82, %s96
      %p98 = scmp.eq.s32.totalorder %s30, 0
      %p99 = por %p97, %p98
      %s101 = sadd.s32 %s100, 1
      %p104 = scmp.eq.s32.totalorder %s24, 1
      %p105 = scmp.ne.s32.totalorder %s100, %s102
      %p106 = scmp.eq.s32.totalorder %s24, 0
      %p107 = por %p105, %p106
      %p108 = scmp.ne.s32.totalorder %s100, %s102
      %p109 = scmp.eq.s32.totalorder %s29, 1
      %p110 = por %p108, %p109
      %p111 = scmp.ne.s32.totalorder %s102, %s103
      %p112 = scmp.eq.s32.totalorder %s29, 0
      %p113 = por %p111, %p112
      %p114 = scmp.ne.s32.totalorder %s102, %s103
      %p115 = scmp.eq.s32.totalorder %s30, 1
      %p116 = por %p114, %p115
      %p118 = scmp.ne.s32.totalorder %s103, %s117
      %p119 = scmp.eq.s32.totalorder %s30, 0
      %p120 = por %p118, %p119
      %s122 = sadd.s32 %s121, 1
      %p125 = scmp.eq.s32.totalorder %s24, 1
      %p126 = scmp.ne.s32.totalorder %s121, %s123
      %p127 = scmp.eq.s32.totalorder %s24, 0
      %p128 = por %p126, %p127
      %p129 = scmp.ne.s32.totalorder %s121, %s123
      %p130 = scmp.eq.s32.totalorder %s29, 1
      %p131 = por %p129, %p130
      %p132 = scmp.ne.s32.totalorder %s123, %s124
      %p133 = scmp.eq.s32.totalorder %s29, 0
      %p134 = por %p132, %p133
      %p135 = scmp.ne.s32.totalorder %s123, %s124
      %p136 = scmp.eq.s32.totalorder %s30, 1
      %p137 = por %p135, %p136
      %p139 = scmp.ne.s32.totalorder %s124, %s138
      %p140 = scmp.eq.s32.totalorder %s30, 0
      %p141 = por %p139, %p140
      %s143 = sadd.s32 %s142, 1
      %p146 = scmp.eq.s32.totalorder %s24, 1
      %p147 = scmp.ne.s32.totalorder %s142, %s144
      %p148 = scmp.eq.s32.totalorder %s24, 0
      %p149 = por %p147, %p148
      %p150 = scmp.ne.s32.totalorder %s142, %s144
      %p151 = scmp.eq.s32.totalorder %s29, 1
      %p152 = por %p150, %p151
      %p153 = scmp.ne.s32.totalorder %s144, %s145
      %p154 = scmp.eq.s32.totalorder %s29, 0
      %p155 = por %p153, %p154
      %p156 = scmp.ne.s32.totalorder %s144, %s145
      %p157 = scmp.eq.s32.totalorder %s30, 1
      %p158 = por %p156, %p157
      %p160 = scmp.ne.s32.totalorder %s145, %s159
      %p161 = scmp.eq.s32.totalorder %s30, 0
      %p162 = por %p160, %p161
      %s164 = sadd.s32 %s163, 1
      %p167 = scmp.eq.s32.totalorder %s24, 1
      %p168 = scmp.ne.s32.totalorder %s163, %s165
      %p169 = scmp.eq.s32.totalorder %s24, 0
      %p170 = por %p168, %p169
      %p171 = scmp.ne.s32.totalorder %s163, %s165
      %p172 = scmp.eq.s32.totalorder %s29, 1
      %p173 = por %p171, %p172
      %p174 = scmp.ne.s32.totalorder %s165, %s166
      %p175 = scmp.eq.s32.totalorder %s29, 0
      %p176 = por %p174, %p175
      %p177 = scmp.ne.s32.totalorder %s165, %s166
      %p178 = scmp.eq.s32.totalorder %s30, 1
      %p179 = por %p177, %p178
      %p181 = scmp.ne.s32.totalorder %s166, %s180
      %p182 = scmp.eq.s32.totalorder %s30, 0
      %p183 = por %p181, %p182
      %s185 = sadd.s32 %s184, 1
      %p188 = scmp.eq.s32.totalorder %s24, 1
      %p189 = scmp.ne.s32.totalorder %s184, %s186
      %p190 = scmp.eq.s32.totalorder %s24, 0
      %p191 = por %p189, %p190
      %p192 = scmp.ne.s32.totalorder %s184, %s186
      %p193 = scmp.eq.s32.totalorder %s29, 1
      %p194 = por %p192, %p193
      %p195 = scmp.ne.s32.totalorder %s186, %s187
      %p196 = scmp.eq.s32.totalorder %s29, 0
      %p197 = por %p195, %p196
      %p198 = scmp.ne.s32.totalorder %s186, %s187
      %p199 = scmp.eq.s32.totalorder %s30, 1
      %p200 = por %p198, %p199
      %p202 = scmp.ne.s32.totalorder %s187, %s201
      %p203 = scmp.eq.s32.totalorder %s30, 0
      %p204 = por %p202, %p203
      %s206 = sadd.s32 %s205, 1
      %p209 = scmp.eq.s32.totalorder %s24, 1
      %p210 = scmp.ne.s32.totalorder %s205, %s207
      %p211 = scmp.eq.s32.totalorder %s24, 0
      %p212 = por %p210, %p211
      %p213 = scmp.ne.s32.totalorder %s205, %s207
      %p214 = scmp.eq.s32.totalorder %s29, 1
      %p215 = por %p213, %p214
      %p216 = scmp.ne.s32.totalorder %s207, %s208
      %p217 = scmp.eq.s32.totalorder %s29, 0
      %p218 = por %p216, %p217
      %p219 = scmp.ne.s32.totalorder %s207, %s208
      %p220 = scmp.eq.s32.totalorder %s30, 1
      %p221 = por %p219, %p220
      %p223 = scmp.ne.s32.totalorder %s208, %s222
      %p224 = scmp.eq.s32.totalorder %s30, 0
      %p225 = por %p223, %p224
      %s227 = sadd.s32 %s226, 1
      %p230 = scmp.eq.s32.totalorder %s24, 1
      %p231 = scmp.ne.s32.totalorder %s226, %s228
      %p232 = scmp.eq.s32.totalorder %s24, 0
      %p233 = por %p231, %p232
      %p234 = scmp.ne.s32.totalorder %s226, %s228
      %p235 = scmp.eq.s32.totalorder %s29, 1
      %p236 = por %p234, %p235
      %p237 = scmp.ne.s32.totalorder %s228, %s229
      %p238 = scmp.eq.s32.totalorder %s29, 0
      %p239 = por %p237, %p238
      %p240 = scmp.ne.s32.totalorder %s228, %s229
      %p241 = scmp.eq.s32.totalorder %s30, 1
      %p242 = por %p240, %p241
      %p244 = scmp.ne.s32.totalorder %s229, %s243
      %p245 = scmp.eq.s32.totalorder %s30, 0
      %p246 = por %p244, %p245
      %s247 = ssub.s32 %s24, %s31
      %p248 = scmp.eq.s32.totalorder %s247, 0
      %s250 = sadd.s32 %s249, 1
      %s251 = scalar_select %p248, %s249, %s250
      %p254 = pneg %p248
      %p255 = scmp.eq.s32.totalorder %s24, 1
      %p256 = por %p254, %p255
      %p257 = scmp.ne.s32.totalorder %s249, %s252
      %p258 = scmp.eq.s32.totalorder %s24, 0
      %p259 = por %p257, %p258
      %p260 = scmp.ne.s32.totalorder %s249, %s252
      %p261 = scmp.eq.s32.totalorder %s29, 1
      %p262 = por %p260, %p261
      %p263 = scmp.ne.s32.totalorder %s252, %s253
      %p264 = scmp.eq.s32.totalorder %s29, 0
      %p265 = por %p263, %p264
      %p266 = scmp.ne.s32.totalorder %s252, %s253
      %p267 = scmp.eq.s32.totalorder %s30, 1
      %p268 = por %p266, %p267
      %p270 = scmp.ne.s32.totalorder %s253, %s269
      %p271 = scmp.eq.s32.totalorder %s30, 0
      %p272 = por %p270, %p271
      %p273 = scmp.le.s32.totalorder 1, %s24
      %p274 = scmp.lt.s32.totalorder %s24, 3
      %p275 = pnand %p273, %p274
      %p276 = pneg %p275
      // Predicated region
      $region9: #{tpu_custom_call.1} parent=5 // pred_check
        _
      $region10: #{tpu_custom_call.1} parent=5 // pred_check_branch
        %278 = sbr.rel (%p275) target = $region12
      $region11: #{tpu_custom_call.1} parent=5 // pred_region
        %s279 = ssub.s32 %s24, 1
        // Predicated region
        $region13: #{tpu_custom_call.1} parent=11 // pred_check
          %p280 = pneg %p71
        $region14: #{tpu_custom_call.1} parent=11 // pred_check_branch
          %282 = sbr.rel (%p280) target = $region16
        $region15: #{tpu_custom_call.1} parent=11 // pred_region
          %s284 = ssub.s32 128, 128
          %285 = vsyncadd [#allocation6], %s284
          %s286 = sshll.u32 [#allocation5], 4
          %s287 = int_to_ptr.vmem [resolvable:$true] %s286
          %292 = dma.hbm_to_vmem [thread:$0]  %s1, 128, %s287, [#allocation6], 64, 64, 4
        $region16: #{tpu_custom_call.1} parent=11 // pred_fallthru
          _
        // Predicated region
        $region17: #{tpu_custom_call.1} parent=11 // pred_check
          %p293 = pneg %p92
        $region18: #{tpu_custom_call.1} parent=11 // pred_check_branch
          %295 = sbr.rel (%p293) target = $region20
        $region19: #{tpu_custom_call.1} parent=11 // pred_region
          _
        $region20: #{tpu_custom_call.1} parent=11 // pred_fallthru
          _
        // Predicated region
        $region21: #{tpu_custom_call.1} parent=11 // pred_check
          %p296 = pneg %p113
        $region22: #{tpu_custom_call.1} parent=11 // pred_check_branch
          %298 = sbr.rel (%p296) target = $region24
        $region23: #{tpu_custom_call.1} parent=11 // pred_region
          _
        $region24: #{tpu_custom_call.1} parent=11 // pred_fallthru
          _
        // Predicated region
        $region25: #{tpu_custom_call.1} parent=11 // pred_check
          %p299 = pneg %p134
        $region26: #{tpu_custom_call.1} parent=11 // pred_check_branch
          %301 = sbr.rel (%p299) target = $region28
        $region27: #{tpu_custom_call.1} parent=11 // pred_region
          %s303 = ssub.s32 256, 256
          %304 = vsyncadd [#allocation6], %s303
          %s305 = sshll.u32 [#allocation7], 4
          %s306 = int_to_ptr.vmem [resolvable:$true] %s305
          %311 = dma.hbm_to_vmem [thread:$0]  %s4, 256, %s306, [#allocation6], 64, 64, 4
        $region28: #{tpu_custom_call.1} parent=11 // pred_fallthru
          _
        // Predicated region
        $region29: #{tpu_custom_call.1} parent=11 // pred_check
          %p312 = pneg %p155
        $region30: #{tpu_custom_call.1} parent=11 // pred_check_branch
          %314 = sbr.rel (%p312) target = $region32
        $region31: #{tpu_custom_call.1} parent=11 // pred_region
          _
        $region32: #{tpu_custom_call.1} parent=11 // pred_fallthru
          _
        // Predicated region
        $region33: #{tpu_custom_call.1} parent=11 // pred_check
          %p315 = pneg %p176
        $region34: #{tpu_custom_call.1} parent=11 // pred_check_branch
          %317 = sbr.rel (%p315) target = $region36
        $region35: #{tpu_custom_call.1} parent=11 // pred_region
          %s319 = ssub.s32 256, 256
          %320 = vsyncadd [#allocation9], %s319
          %s321 = sshll.u32 [#allocation8], 4
          %s322 = int_to_ptr.vmem [resolvable:$true] %s321
          %327 = dma.hbm_to_vmem [thread:$0]  %s6, 256, %s322, [#allocation9], 64, 64, 4
        $region36: #{tpu_custom_call.1} parent=11 // pred_fallthru
          _
        // Predicated region
        $region37: #{tpu_custom_call.1} parent=11 // pred_check
          %p328 = pneg %p197
        $region38: #{tpu_custom_call.1} parent=11 // pred_check_branch
          %330 = sbr.rel (%p328) target = $region40
        $region39: #{tpu_custom_call.1} parent=11 // pred_region
          _
        $region40: #{tpu_custom_call.1} parent=11 // pred_fallthru
          _
        // Predicated region
        $region41: #{tpu_custom_call.1} parent=11 // pred_check
          %p331 = pneg %p218
        $region42: #{tpu_custom_call.1} parent=11 // pred_check_branch
          %333 = sbr.rel (%p331) target = $region44
        $region43: #{tpu_custom_call.1} parent=11 // pred_region
          _
        $region44: #{tpu_custom_call.1} parent=11 // pred_fallthru
          _
        // Predicated region
        $region45: #{tpu_custom_call.1} parent=11 // pred_check
          %p334 = pneg %p239
        $region46: #{tpu_custom_call.1} parent=11 // pred_check_branch
          %336 = sbr.rel (%p334) target = $region48
        $region47: #{tpu_custom_call.1} parent=11 // pred_region
          _
        $region48: #{tpu_custom_call.1} parent=11 // pred_fallthru
          _
      $region12: #{tpu_custom_call.1} parent=5 // pred_fallthru
        _
      %p337 = scmp.lt.s32.totalorder %s24, 2
      // Predicated region
      $region49: #{tpu_custom_call.1} parent=5 // pred_check
        %p338 = pneg %p337
      $region50: #{tpu_custom_call.1} parent=5 // pred_check_branch
        %340 = sbr.rel (%p338) target = $region52
      $region51: #{tpu_custom_call.1} parent=5 // pred_region
        // Predicated region
        $region53: #{tpu_custom_call.1} parent=51 // pred_check
          %p341 = pneg %p44
        $region54: #{tpu_custom_call.1} parent=51 // pred_check_branch
          %343 = sbr.rel (%p341) target = $region56
        $region55: #{tpu_custom_call.1} parent=51 // pred_region
          %s344 = sand.u32 %s34, 1
          %s345 = scalar_lea.sflag [#allocation3], %s344
          %s346 = sand.u32 %s34, 1
          %s347 = smul.addr %s346, 32
          %s348 = scalar_lea.vmem [#allocation2], %s347
          %s349 = smul.u32 8, %s24
          %s351 = ssub.s32 512, 512
          %352 = vsyncadd %s345, %s351
          %s353 = smul.addr %s349, 64
          %s354 = scalar_lea.hbm %s0, %s353
          %s355 = sshll.u32 %s348, 4
          %s356 = int_to_ptr.vmem [resolvable:$true] %s355
          %361 = dma.hbm_to_vmem [thread:$0]  %s354, 512, %s356, %s345, 64, 64, 4
        $region56: #{tpu_custom_call.1} parent=51 // pred_fallthru
          _
      $region52: #{tpu_custom_call.1} parent=5 // pred_fallthru
        _
      %p362 = scmp.le.s32.totalorder 1, %s24
      %p363 = scmp.lt.s32.totalorder %s24, 3
      %p364 = pnand %p362, %p363
      %p365 = pneg %p364
      // Predicated region
      $region57: #{tpu_custom_call.1} parent=5 // pred_check
        _
      $region58: #{tpu_custom_call.1} parent=5 // pred_check_branch
        %367 = sbr.rel (%p364) target = $region60
      $region59: #{tpu_custom_call.1} parent=5 // pred_region
        %s368 = ssub.s32 %s24, 1
        %s369 = sand.u32 %s37, 1
        %s370 = scalar_lea.sflag [#allocation3], %s369
        %s371 = sand.u32 %s37, 1
        %s372 = smul.addr %s371, 32
        %s373 = scalar_lea.vmem [#allocation2], %s372
        // Predicated region
        $region61: #{tpu_custom_call.1} parent=59 // pred_check
          %p374 = pneg %p50
        $region62: #{tpu_custom_call.1} parent=59 // pred_check_branch
          %376 = sbr.rel (%p374) target = $region64
        $region63: #{tpu_custom_call.1} parent=59 // pred_region
          %377 = dma.done %s370, 512
        $region64: #{tpu_custom_call.1} parent=59 // pred_fallthru
          _
        // Predicated region
        $region65: #{tpu_custom_call.1} parent=59 // pred_check
          %p378 = pneg %p71
        $region66: #{tpu_custom_call.1} parent=59 // pred_check_branch
          %380 = sbr.rel (%p378) target = $region68
        $region67: #{tpu_custom_call.1} parent=59 // pred_region
          %381 = dma.done [#allocation6], 128
        $region68: #{tpu_custom_call.1} parent=59 // pred_fallthru
          _
        // Predicated region
        $region69: #{tpu_custom_call.1} parent=59 // pred_check
          %p382 = pneg %p134
        $region70: #{tpu_custom_call.1} parent=59 // pred_check_branch
          %384 = sbr.rel (%p382) target = $region72
        $region71: #{tpu_custom_call.1} parent=59 // pred_region
          %385 = dma.done [#allocation6], 256
        $region72: #{tpu_custom_call.1} parent=59 // pred_fallthru
          _
        // Predicated region
        $region73: #{tpu_custom_call.1} parent=59 // pred_check
          %p386 = pneg %p176
        $region74: #{tpu_custom_call.1} parent=59 // pred_check_branch
          %388 = sbr.rel (%p386) target = $region76
        $region75: #{tpu_custom_call.1} parent=59 // pred_region
          %389 = dma.done [#allocation9], 256
        $region76: #{tpu_custom_call.1} parent=59 // pred_fallthru
          _
        %s390 = sand.u32 %s37, 1
        %s391 = scalar_lea.sflag [#allocation3], %s390
        %s392 = sand.u32 %s37, 1
        %s393 = smul.addr %s392, 32
        %s394 = scalar_lea.vmem [#allocation2], %s393
        %p395 = pneg %p50
        %p396 = pneg %p47
        %p397 = pneg %p71
        %p398 = pneg %p68
        %p399 = pneg %p92
        %p400 = pneg %p89
        %p401 = pneg %p113
        %p402 = pneg %p110
        %p403 = pneg %p134
        %p404 = pneg %p131
        %p405 = pneg %p155
        %p406 = pneg %p152
        %p407 = pneg %p176
        %p408 = pneg %p173
        %p409 = pneg %p197
        %p410 = pneg %p194
        %p411 = pneg %p218
        %p412 = pneg %p215
        %p413 = pneg %p239
        %p414 = pneg %p236
        %p415 = pneg %p265
        %p416 = pneg %p262
        %s417 = sand.u32 %s252, 1
        %s418 = scalar_lea.sflag [#allocation4], %s417
        %s419 = sand.u32 %s252, 1
        %s420 = smul.addr %s419, 8
        %s421 = scalar_lea.vmem [#allocation10], %s420
        %s422 = smul.u32 8, %s29
        %v424 = vld [vmem:[%s373] sm:$0xf]
        %v425 = vld [vmem:[%s373 + $0x4] sm:$0xf]
        %v426 = vld [vmem:[%s373 + $0x8] sm:$0xf]
        %v427 = vld [vmem:[%s373 + $0xc] sm:$0xf]
        %v428 = vld [vmem:[%s373 + $0x10] sm:$0xf]
        %v429 = vld [vmem:[%s373 + $0x14] sm:$0xf]
        %v430 = vld [vmem:[%s373 + $0x18] sm:$0xf]
        %v431 = vld [vmem:[%s373 + $0x1c] sm:$0xf]
        %v432 = vunpack.c.l.bf16 %v424
        %v433 = vunpack.c.l.bf16 %v425
        %v434 = vunpack.c.l.bf16 %v426
        %v435 = vunpack.c.l.bf16 %v427
        %v436 = vunpack.c.l.bf16 %v428
        %v437 = vunpack.c.l.bf16 %v429
        %v438 = vunpack.c.l.bf16 %v430
        %v439 = vunpack.c.l.bf16 %v431
        %v440 = vld [vmem:[#allocation5] sm:$0xf]
        %v441 = vld [vmem:[#allocation5 + $0x4] sm:$0x1]
        %v442 = vunpack.c.l.bf16 %v440
        %v443 = vunpack.c.l.bf16 %v441
        %vm444 = vcmask 261120
        %v445 = vsel %vm444, %v432, 0.0
        %v446 = vrot.slane %v445, 4
        %v447 = vadd.f32 %v445, %v446
        %v448 = vrot.slane %v447, 2
        %v449 = vadd.f32 %v447, %v448
        %v450 = vrot.slane %v449, 1
        %v451 = vadd.f32 %v449, %v450
        %v452 = vsel %vm444, %v433, 0.0
        %v453 = vrot.slane %v452, 4
        %v454 = vadd.f32 %v452, %v453
        %v455 = vrot.slane %v454, 2
        %v456 = vadd.f32 %v454, %v455
        %v457 = vrot.slane %v456, 1
        %v458 = vadd.f32 %v456, %v457
        %v459 = vsel %vm444, %v434, 0.0
        %v460 = vrot.slane %v459, 4
        %v461 = vadd.f32 %v459, %v460
        %v462 = vrot.slane %v461, 2
        %v463 = vadd.f32 %v461, %v462
        %v464 = vrot.slane %v463, 1
        %v465 = vadd.f32 %v463, %v464
        %v466 = vsel %vm444, %v435, 0.0
        %v467 = vrot.slane %v466, 4
        %v468 = vadd.f32 %v466, %v467
        %v469 = vrot.slane %v468, 2
        %v470 = vadd.f32 %v468, %v469
        %v471 = vrot.slane %v470, 1
        %v472 = vadd.f32 %v470, %v471
        %v473 = vsel %vm444, %v436, 0.0
        %v474 = vrot.slane %v473, 4
        %v475 = vadd.f32 %v473, %v474
        %v476 = vrot.slane %v475, 2
        %v477 = vadd.f32 %v475, %v476
        %v478 = vrot.slane %v477, 1
        %v479 = vadd.f32 %v477, %v478
        %v480 = vsel %vm444, %v437, 0.0
        %v481 = vrot.slane %v480, 4
        %v482 = vadd.f32 %v480, %v481
        %v483 = vrot.slane %v482, 2
        %v484 = vadd.f32 %v482, %v483
        %v485 = vrot.slane %v484, 1
        %v486 = vadd.f32 %v484, %v485
        %v487 = vsel %vm444, %v438, 0.0
        %v488 = vrot.slane %v487, 4
        %v489 = vadd.f32 %v487, %v488
        %v490 = vrot.slane %v489, 2
        %v491 = vadd.f32 %v489, %v490
        %v492 = vrot.slane %v491, 1
        %v493 = vadd.f32 %v491, %v492
        %v494 = vsel %vm444, %v439, 0.0
        %v495 = vrot.slane %v494, 4
        %v496 = vadd.f32 %v494, %v495
        %v497 = vrot.slane %v496, 2
        %v498 = vadd.f32 %v496, %v497
        %v499 = vrot.slane %v498, 1
        %v500 = vadd.f32 %v498, %v499
        %v501 = vrcp.pop 8.0
        %v502 = vmul.f32 %v451, %v501
        %v503 = vmul.f32 %v458, %v501
        %v504 = vmul.f32 %v465, %v501
        %v505 = vmul.f32 %v472, %v501
        %v506 = vmul.f32 %v479, %v501
        %v507 = vmul.f32 %v486, %v501
        %v508 = vmul.f32 %v493, %v501
        %v509 = vmul.f32 %v500, %v501
        %v510 = vlaneseq
        %v511 = vshrl.u32 %v510, 7
        %v512 = vsub.s32 0, %v511
        %v513 = vrot.slane %v442, %v512
        %v514 = vadd.f32 %v502, %v513
        %v515 = vadd.f32 %v503, %v513
        %v516 = vadd.f32 %v504, %v513
        %v517 = vadd.f32 %v505, %v513
        %v518 = vadd.f32 %v506, %v513
        %v519 = vadd.f32 %v507, %v513
        %v520 = vadd.f32 %v508, %v513
        %v521 = vadd.f32 %v509, %v513
        %v522 = vpack.c.bf16 %v514, %v514
        %v523 = vpack.c.bf16 %v515, %v515
        %v524 = vpack.c.bf16 %v516, %v516
        %v525 = vpack.c.bf16 %v517, %v517
        %v526 = vpack.c.bf16 %v518, %v518
        %v527 = vpack.c.bf16 %v519, %v519
        %v528 = vpack.c.bf16 %v520, %v520
        %v529 = vpack.c.bf16 %v521, %v521
        %vm532 = vcmask 1046528
        %v533 = vrot.slane %v442, 1
        %v534 = vrot.slane %v443, 1
        %v535 = vsel %vm532, %v533, %v534
        %v537 = vadd.f32 %v432, %v535
        %v538 = vadd.f32 %v433, %v535
        %v539 = vadd.f32 %v434, %v535
        %v540 = vadd.f32 %v435, %v535
        %v541 = vadd.f32 %v436, %v535
        %v542 = vadd.f32 %v437, %v535
        %v543 = vadd.f32 %v438, %v535
        %v544 = vadd.f32 %v439, %v535
        %v545 = vpack.c.bf16 %v537, %v537
        %v546 = vpack.c.bf16 %v538, %v538
        %v547 = vpack.c.bf16 %v539, %v539
        %v548 = vpack.c.bf16 %v540, %v540
        %v549 = vpack.c.bf16 %v541, %v541
        %v550 = vpack.c.bf16 %v542, %v542
        %v551 = vpack.c.bf16 %v543, %v543
        %v552 = vpack.c.bf16 %v544, %v544
        %v553 = vld [vmem:[%s2] sm:$0xf]
        %v554 = vld [vmem:[%s2 + $0x4] sm:$0xf]
        %v555 = vld [vmem:[%s2 + $0x8] sm:$0xf]
        %v556 = vld [vmem:[%s2 + $0xc] sm:$0xf]
        %v557 = vld [vmem:[%s3] sm:$0x1]
        %v559 = vlaneseq
        %v560 = vshrl.u32 %v559, 7
        %v561 = vsub.s32 0, %v560
        %v562 = vrot.slane %v557, %v561
        %v572 = vunpack.c.l.b16 %v522
        %v573 = vunpack.c.l.b16 %v523
        %v574 = vunpack.c.l.b16 %v524
        %v575 = vunpack.c.l.b16 %v525
        %v576 = vunpack.c.l.b16 %v526
        %v577 = vunpack.c.l.b16 %v527
        %v578 = vunpack.c.l.b16 %v528
        %v579 = vunpack.c.l.b16 %v529
        %v580 = vrot.slane %v573, 7
        %vm581 = vcmask 1041409
        %v582 = vsel %vm581, %v580, %v572
        %v583 = vrot.slane %v574, 6
        %vm584 = vcmask 1042434
        %v585 = vsel %vm584, %v583, %v582
        %v586 = vrot.slane %v575, 5
        %vm587 = vcmask 1043459
        %v588 = vsel %vm587, %v586, %v585
        %v589 = vrot.slane %v576, 4
        %vm590 = vcmask 1044484
        %v591 = vsel %vm590, %v589, %v588
        %v592 = vrot.slane %v577, 3
        %vm593 = vcmask 1045509
        %v594 = vsel %vm593, %v592, %v591
        %v595 = vrot.slane %v578, 2
        %vm596 = vcmask 1046534
        %v597 = vsel %vm596, %v595, %v594
        %v598 = vrot.slane %v579, 1
        %vm599 = vcmask 1047559
        %v600 = vsel %vm599, %v598, %v597
        %v601 = vpack.c.b16 %v600, %v600
        %v606 = vunpack.c.l.b16 %v553
        %v607 = vunpack.c.l.b16 %v554
        %v608 = vunpack.c.l.b16 %v555
        %v609 = vunpack.c.l.b16 %v556
        %v610 = vpack.c.b16 %v607, %v606
        %v611 = vpack.c.b16 %v609, %v608
        %v615 = vsel %vm444, %v601, 0
        %617 = vmatprep.subr.bf16.mxu0 0
        %618 = vmatpush1.bf16.msra.mxu0 0
        %619 = vmatprep.subr.bf16.mxu0 0
        %620 = vmatpush1.bf16.msra.mxu0 0
        %621 = vmatprep.subr.bf16.mxu0 0
        %622 = vmatpush1.bf16.msra.mxu0 0
        %623 = vmatprep.subr.bf16.mxu0 0
        %624 = vmatpush1.bf16.msra.mxu0 0
        %625 = vmatprep.subr.bf16.mxu0 0
        %626 = vmatpush1.bf16.msra.mxu0 0
        %627 = vmatprep.subr.bf16.mxu0 0
        %628 = vmatpush1.bf16.msra.mxu0 0
        %629 = vmatprep.subr.bf16.mxu0 0
        %630 = vmatpush1.bf16.msra.mxu0 %v611
        %631 = vmatprep.subr.bf16.mxu0 0
        %632 = vmatpush1.bf16.msra.mxu0 %v610
        %633 = vmatprep.subr.bf16.mxu0 0
        %634 = vmatpush2.bf16.msra.mxu0 0
        %635 = vmatprep.subr.bf16.mxu0 0
        %636 = vmatpush2.bf16.msra.mxu0 0
        %637 = vmatprep.subr.bf16.mxu0 0
        %638 = vmatpush2.bf16.msra.mxu0 0
        %639 = vmatprep.subr.bf16.mxu0 0
        %640 = vmatpush2.bf16.msra.mxu0 0
        %641 = vmatprep.subr.bf16.mxu0 0
        %642 = vmatpush2.bf16.msra.mxu0 0
        %643 = vmatprep.subr.bf16.mxu0 0
        %644 = vmatpush2.bf16.msra.mxu0 0
        %645 = vmatprep.subr.bf16.mxu0 0
        %646 = vmatpush2.bf16.msra.mxu0 0
        %647 = vmatprep.subr.bf16.mxu0 0
        %648 = vmatpush2.bf16.msra.mxu0 0
        %649 = vmatprep.mubr.bf16.mxu0 0
        %650 = vmatmul.mubr.bf16.gmra.mxu0 %v615
        %v651 = vpop.f32.mrf.mxu0
        %v652 = vadd.f32 %v562, %v651
        %v653 = vpop.f32.mrf.mxu0
        %v654 = vpop.f32.mrf.mxu0
        %v655 = vpop.f32.mrf.mxu0
        %656 = vdwg.mxu0
        %v657 = vld [vmem:[#allocation7] sm:$0xf]
        %v658 = vld [vmem:[#allocation7 + $0x4] sm:$0xf]
        %v659 = vld [vmem:[#allocation7 + $0x8] sm:$0xf]
        %v660 = vld [vmem:[#allocation7 + $0xc] sm:$0xf]
        %v661 = vld [vmem:[%s5] sm:$0x1]
        %v663 = vlaneseq
        %v664 = vshrl.u32 %v663, 7
        %v665 = vsub.s32 0, %v664
        %v666 = vrot.slane %v661, %v665
        %v676 = vunpack.c.l.b16 %v545
        %v677 = vunpack.c.l.b16 %v546
        %v678 = vunpack.c.l.b16 %v547
        %v679 = vunpack.c.l.b16 %v548
        %v680 = vunpack.c.l.b16 %v549
        %v681 = vunpack.c.l.b16 %v550
        %v682 = vunpack.c.l.b16 %v551
        %v683 = vunpack.c.l.b16 %v552
        %v684 = vpack.c.b16 %v677, %v676
        %v685 = vpack.c.b16 %v679, %v678
        %v686 = vpack.c.b16 %v681, %v680
        %v687 = vpack.c.b16 %v683, %v682
        %v692 = vunpack.c.l.b16 %v657
        %v693 = vunpack.c.l.b16 %v658
        %v694 = vunpack.c.l.b16 %v659
        %v695 = vunpack.c.l.b16 %v660
        %v696 = vpack.c.b16 %v693, %v692
        %v697 = vpack.c.b16 %v695, %v694
        %v701 = vsel %vm444, %v684, 0
        %v704 = vsel %vm444, %v685, 0
        %v707 = vsel %vm444, %v686, 0
        %v710 = vsel %vm444, %v687, 0
        %712 = vmatprep.subr.bf16.mxu0 0
        %713 = vmatpush1.bf16.msra.mxu0 0
        %714 = vmatprep.subr.bf16.mxu0 0
        %715 = vmatpush1.bf16.msra.mxu0 0
        %716 = vmatprep.subr.bf16.mxu0 0
        %717 = vmatpush1.bf16.msra.mxu0 0
        %718 = vmatprep.subr.bf16.mxu0 0
        %719 = vmatpush1.bf16.msra.mxu0 0
        %720 = vmatprep.subr.bf16.mxu0 0
        %721 = vmatpush1.bf16.msra.mxu0 0
        %722 = vmatprep.subr.bf16.mxu0 0
        %723 = vmatpush1.bf16.msra.mxu0 0
        %724 = vmatprep.subr.bf16.mxu0 0
        %725 = vmatpush1.bf16.msra.mxu0 %v697
        %726 = vmatprep.subr.bf16.mxu0 0
        %727 = vmatpush1.bf16.msra.mxu0 %v696
        %728 = vmatprep.subr.bf16.mxu0 0
        %729 = vmatpush2.bf16.msra.mxu0 0
        %730 = vmatprep.subr.bf16.mxu0 0
        %731 = vmatpush2.bf16.msra.mxu0 0
        %732 = vmatprep.subr.bf16.mxu0 0
        %733 = vmatpush2.bf16.msra.mxu0 0
        %734 = vmatprep.subr.bf16.mxu0 0
        %735 = vmatpush2.bf16.msra.mxu0 0
        %736 = vmatprep.subr.bf16.mxu0 0
        %737 = vmatpush2.bf16.msra.mxu0 0
        %738 = vmatprep.subr.bf16.mxu0 0
        %739 = vmatpush2.bf16.msra.mxu0 0
        %740 = vmatprep.subr.bf16.mxu0 0
        %741 = vmatpush2.bf16.msra.mxu0 0
        %742 = vmatprep.subr.bf16.mxu0 0
        %743 = vmatpush2.bf16.msra.mxu0 0
        %744 = vmatprep.mubr.bf16.mxu0 0
        %745 = vmatmul.mubr.bf16.gmra.mxu0 %v701
        %v746 = vpop.f32.mrf.mxu0
        %v747 = vadd.f32 %v666, %v746
        %v748 = vpop.f32.mrf.mxu0
        %v749 = vpop.f32.mrf.mxu0
        %v750 = vadd.f32 %v666, %v749
        %v751 = vpop.f32.mrf.mxu0
        %752 = vmatprep.mubr.bf16.mxu0 0
        %753 = vmatmul.mubr.bf16.gmra.mxu0 %v704
        %v754 = vpop.f32.mrf.mxu0
        %v755 = vadd.f32 %v666, %v754
        %v756 = vpop.f32.mrf.mxu0
        %v757 = vpop.f32.mrf.mxu0
        %v758 = vadd.f32 %v666, %v757
        %v759 = vpop.f32.mrf.mxu0
        %760 = vmatprep.mubr.bf16.mxu0 0
        %761 = vmatmul.mubr.bf16.gmra.mxu0 %v707
        %v762 = vpop.f32.mrf.mxu0
        %v763 = vadd.f32 %v666, %v762
        %v764 = vpop.f32.mrf.mxu0
        %v765 = vpop.f32.mrf.mxu0
        %v766 = vadd.f32 %v666, %v765
        %v767 = vpop.f32.mrf.mxu0
        %768 = vmatprep.mubr.bf16.mxu0 0
        %769 = vmatmul.mubr.bf16.gmra.mxu0 %v710
        %v770 = vpop.f32.mrf.mxu0
        %v771 = vadd.f32 %v666, %v770
        %v772 = vpop.f32.mrf.mxu0
        %v773 = vpop.f32.mrf.mxu0
        %v774 = vadd.f32 %v666, %v773
        %v775 = vpop.f32.mrf.mxu0
        %776 = vdwg.mxu0
        %v778 = vcombine.high %v652, %v652
        %v780 = vunpack.c.l.s4 1966171168
        %v781 = vunpack.c.0.s8 %v780
        %v782 = vlaneseq
        %v783 = vshrl.u32 %v782, 7
        %v784 = vsub.s32 %v781, %v783
        %v785 = vrot.slane %v652, %v784
        %v787 = vunpack.c.l.s4 1966171168
        %v788 = vunpack.c.0.s8 %v787
        %v789 = vlaneseq
        %v790 = vshrl.u32 %v789, 7
        %v791 = vsub.s32 %v788, %v790
        %v792 = vrot.slane %v778, %v791
        %v793 = vcombine.high %v785, %v785
        %v794 = vcombine.high %v792, %v792
        %v796 = vunpack.c.l.s4 1966171168
        %v797 = vunpack.c.0.s8 %v796
        %v798 = vlaneseq
        %v799 = vshrl.u32 %v798, 7
        %v800 = vsub.s32 %v797, %v799
        %v801 = vrot.slane %v785, %v800
        %v803 = vunpack.c.l.s4 1966171168
        %v804 = vunpack.c.0.s8 %v803
        %v805 = vlaneseq
        %v806 = vshrl.u32 %v805, 7
        %v807 = vsub.s32 %v804, %v806
        %v808 = vrot.slane %v792, %v807
        %v810 = vunpack.c.l.s4 1966171168
        %v811 = vunpack.c.0.s8 %v810
        %v812 = vlaneseq
        %v813 = vshrl.u32 %v812, 7
        %v814 = vsub.s32 %v811, %v813
        %v815 = vrot.slane %v793, %v814
        %v817 = vunpack.c.l.s4 1966171168
        %v818 = vunpack.c.0.s8 %v817
        %v819 = vlaneseq
        %v820 = vshrl.u32 %v819, 7
        %v821 = vsub.s32 %v818, %v820
        %v822 = vrot.slane %v794, %v821
        %v823 = vcombine.high %v801, %v801
        %v824 = vcombine.high %v808, %v808
        %v825 = vcombine.high %v815, %v815
        %v826 = vcombine.high %v822, %v822
        %v827 = vlaneseq
        %v828 = vshrl.u32 %v827, 7
        %v829 = vsub.s32 0, %v828
        %v830 = vrot.slane %v801, %v829
        %v831 = vlaneseq
        %v832 = vshrl.u32 %v831, 7
        %v833 = vsub.s32 0, %v832
        %v834 = vrot.slane %v815, %v833
        %v835 = vlaneseq
        %v836 = vshrl.u32 %v835, 7
        %v837 = vsub.s32 0, %v836
        %v838 = vrot.slane %v823, %v837
        %v839 = vlaneseq
        %v840 = vshrl.u32 %v839, 7
        %v841 = vsub.s32 0, %v840
        %v842 = vrot.slane %v825, %v841
        %v843 = vlaneseq
        %v844 = vshrl.u32 %v843, 7
        %v845 = vsub.s32 0, %v844
        %v846 = vrot.slane %v808, %v845
        %v847 = vlaneseq
        %v848 = vshrl.u32 %v847, 7
        %v849 = vsub.s32 0, %v848
        %v850 = vrot.slane %v822, %v849
        %v851 = vlaneseq
        %v852 = vshrl.u32 %v851, 7
        %v853 = vsub.s32 0, %v852
        %v854 = vrot.slane %v824, %v853
        %v855 = vlaneseq
        %v856 = vshrl.u32 %v855, 7
        %v857 = vsub.s32 0, %v856
        %v858 = vrot.slane %v826, %v857
        %v867 = vmul.f32 %v747, %v830
        %v868 = vmul.f32 %v750, %v834
        %v869 = vmul.f32 %v755, %v838
        %v870 = vmul.f32 %v758, %v842
        %v871 = vmul.f32 %v763, %v846
        %v872 = vmul.f32 %v766, %v850
        %v873 = vmul.f32 %v771, %v854
        %v874 = vmul.f32 %v774, %v858
        %v875 = vpack.c.bf16 %v868, %v867
        %v876 = vpack.c.bf16 %v870, %v869
        %v877 = vpack.c.bf16 %v872, %v871
        %v878 = vpack.c.bf16 %v874, %v873
        %v879 = vld [vmem:[%s8] sm:$0xf]
        %v880 = vld [vmem:[%s8 + $0x4] sm:$0xf]
        %v881 = vld [vmem:[%s8 + $0x8] sm:$0xf]
        %v882 = vld [vmem:[%s8 + $0xc] sm:$0xf]
        %v887 = vunpack.c.l.b16 %v879
        %v888 = vunpack.c.l.b16 %v880
        %v889 = vunpack.c.l.b16 %v881
        %v890 = vunpack.c.l.b16 %v882
        %v891 = vpack.c.b16 %v888, %v887
        %v892 = vpack.c.b16 %v890, %v889
        %v896 = vsel %vm444, %v875, 0
        %v899 = vsel %vm444, %v876, 0
        %v902 = vsel %vm444, %v877, 0
        %v905 = vsel %vm444, %v878, 0
        %907 = vmatprep.subr.bf16.mxu0 0
        %908 = vmatpush1.bf16.msra.mxu0 0
        %909 = vmatprep.subr.bf16.mxu0 0
        %910 = vmatpush1.bf16.msra.mxu0 0
        %911 = vmatprep.subr.bf16.mxu0 0
        %912 = vmatpush1.bf16.msra.mxu0 0
        %913 = vmatprep.subr.bf16.mxu0 0
        %914 = vmatpush1.bf16.msra.mxu0 0
        %915 = vmatprep.subr.bf16.mxu0 0
        %916 = vmatpush1.bf16.msra.mxu0 0
        %917 = vmatprep.subr.bf16.mxu0 0
        %918 = vmatpush1.bf16.msra.mxu0 0
        %919 = vmatprep.subr.bf16.mxu0 0
        %920 = vmatpush1.bf16.msra.mxu0 %v892
        %921 = vmatprep.subr.bf16.mxu0 0
        %922 = vmatpush1.bf16.msra.mxu0 %v891
        %923 = vmatprep.subr.bf16.mxu0 0
        %924 = vmatpush2.bf16.msra.mxu0 0
        %925 = vmatprep.subr.bf16.mxu0 0
        %926 = vmatpush2.bf16.msra.mxu0 0
        %927 = vmatprep.subr.bf16.mxu0 0
        %928 = vmatpush2.bf16.msra.mxu0 0
        %929 = vmatprep.subr.bf16.mxu0 0
        %930 = vmatpush2.bf16.msra.mxu0 0
        %931 = vmatprep.subr.bf16.mxu0 0
        %932 = vmatpush2.bf16.msra.mxu0 0
        %933 = vmatprep.subr.bf16.mxu0 0
        %934 = vmatpush2.bf16.msra.mxu0 0
        %935 = vmatprep.subr.bf16.mxu0 0
        %936 = vmatpush2.bf16.msra.mxu0 0
        %937 = vmatprep.subr.bf16.mxu0 0
        %938 = vmatpush2.bf16.msra.mxu0 0
        %939 = vmatprep.mubr.bf16.mxu0 0
        %940 = vmatmul.mubr.bf16.gmra.mxu0 %v896
        %v941 = vpop.f32.mrf.mxu0
        %v942 = vadd.f32 0.0, %v941
        %v943 = vpop.f32.mrf.mxu0
        %v944 = vpop.f32.mrf.mxu0
        %v945 = vadd.f32 0.0, %v944
        %v946 = vpop.f32.mrf.mxu0
        %947 = vmatprep.mubr.bf16.mxu0 0
        %948 = vmatmul.mubr.bf16.gmra.mxu0 %v899
        %v949 = vpop.f32.mrf.mxu0
        %v950 = vadd.f32 0.0, %v949
        %v951 = vpop.f32.mrf.mxu0
        %v952 = vpop.f32.mrf.mxu0
        %v953 = vadd.f32 0.0, %v952
        %v954 = vpop.f32.mrf.mxu0
        %955 = vmatprep.mubr.bf16.mxu0 0
        %956 = vmatmul.mubr.bf16.gmra.mxu0 %v902
        %v957 = vpop.f32.mrf.mxu0
        %v958 = vadd.f32 0.0, %v957
        %v959 = vpop.f32.mrf.mxu0
        %v960 = vpop.f32.mrf.mxu0
        %v961 = vadd.f32 0.0, %v960
        %v962 = vpop.f32.mrf.mxu0
        %963 = vmatprep.mubr.bf16.mxu0 0
        %964 = vmatmul.mubr.bf16.gmra.mxu0 %v905
        %v965 = vpop.f32.mrf.mxu0
        %v966 = vadd.f32 0.0, %v965
        %v967 = vpop.f32.mrf.mxu0
        %v968 = vpop.f32.mrf.mxu0
        %v969 = vadd.f32 0.0, %v968
        %v970 = vpop.f32.mrf.mxu0
        %971 = vdwg.mxu0
        %v972 = vmul.f32 %v942, 0.35355338
        %v973 = vmul.f32 %v945, 0.35355338
        %v974 = vmul.f32 %v950, 0.35355338
        %v975 = vmul.f32 %v953, 0.35355338
        %v976 = vmul.f32 %v958, 0.35355338
        %v977 = vmul.f32 %v961, 0.35355338
        %v978 = vmul.f32 %v966, 0.35355338
        %v979 = vmul.f32 %v969, 0.35355338
        %980 = vrot.lane.b32.xlu0 %v652, 32
        %v981 = vpop.permute.xlu0 %980
        %v983 = vmul.f32 %v652, %v981
        %v984 = vpack.c.bf16 %v983, %v983
        %986 = vrot.lane.b32.xlu0 %v984, 96
        %v987 = vpop.permute.xlu0 %986
        %v989 = vsel %vm444, %v987, 0
        %991 = vmatprep.subr.bf16.mxu0 0
        %992 = vmatpush1.bf16.msra.mxu0 0
        %993 = vmatprep.subr.bf16.mxu0 0
        %994 = vmatpush1.bf16.msra.mxu0 0
        %995 = vmatprep.subr.bf16.mxu0 0
        %996 = vmatpush1.bf16.msra.mxu0 0
        %997 = vmatprep.subr.bf16.mxu0 0
        %998 = vmatpush1.bf16.msra.mxu0 0
        %999 = vmatprep.subr.bf16.mxu0 0
        %1000 = vmatpush1.bf16.msra.mxu0 0
        %1001 = vmatprep.subr.bf16.mxu0 0
        %1002 = vmatpush1.bf16.msra.mxu0 0
        %1003 = vmatprep.subr.bf16.mxu0 0
        %1004 = vmatpush1.bf16.msra.mxu0 %v892
        %1005 = vmatprep.subr.bf16.mxu0 0
        %1006 = vmatpush1.bf16.msra.mxu0 %v891
        %1007 = vmatprep.subr.bf16.mxu0 0
        %1008 = vmatpush2.bf16.msra.mxu0 0
        %1009 = vmatprep.subr.bf16.mxu0 0
        %1010 = vmatpush2.bf16.msra.mxu0 0
        %1011 = vmatprep.subr.bf16.mxu0 0
        %1012 = vmatpush2.bf16.msra.mxu0 0
        %1013 = vmatprep.subr.bf16.mxu0 0
        %1014 = vmatpush2.bf16.msra.mxu0 0
        %1015 = vmatprep.subr.bf16.mxu0 0
        %1016 = vmatpush2.bf16.msra.mxu0 0
        %1017 = vmatprep.subr.bf16.mxu0 0
        %1018 = vmatpush2.bf16.msra.mxu0 0
        %1019 = vmatprep.subr.bf16.mxu0 0
        %1020 = vmatpush2.bf16.msra.mxu0 0
        %1021 = vmatprep.subr.bf16.mxu0 0
        %1022 = vmatpush2.bf16.msra.mxu0 0
        %1023 = vmatprep.mubr.bf16.mxu0 0
        %1024 = vmatmul.mubr.bf16.gmra.mxu0 %v989
        %v1025 = vpop.f32.mrf.mxu0
        %v1026 = vadd.f32 0.0, %v1025
        %v1027 = vpop.f32.mrf.mxu0
        %v1028 = vpop.f32.mrf.mxu0
        %v1029 = vpop.f32.mrf.mxu0
        %1030 = vdwg.mxu0
        %v1031 = vmul.f32 %v1026, 0.35355338
        %vm1032 = vcmask 31744
        %v1033 = vsel %vm1032, %v972, -inf
        %v1034 = vrot.slane %v1033, 4
        %v1035 = vmax.f32 %v1033, %v1034
        %v1036 = vrot.slane %v1035, 2
        %v1037 = vmax.f32 %v1035, %v1036
        %v1038 = vrot.slane %v1037, 1
        %v1039 = vmax.f32 %v1037, %v1038
        %v1040 = vsel %vm1032, %v973, -inf
        %v1041 = vrot.slane %v1040, 4
        %v1042 = vmax.f32 %v1040, %v1041
        %v1043 = vrot.slane %v1042, 2
        %v1044 = vmax.f32 %v1042, %v1043
        %v1045 = vrot.slane %v1044, 1
        %v1046 = vmax.f32 %v1044, %v1045
        %v1047 = vsel %vm1032, %v974, -inf
        %v1048 = vrot.slane %v1047, 4
        %v1049 = vmax.f32 %v1047, %v1048
        %v1050 = vrot.slane %v1049, 2
        %v1051 = vmax.f32 %v1049, %v1050
        %v1052 = vrot.slane %v1051, 1
        %v1053 = vmax.f32 %v1051, %v1052
        %v1054 = vsel %vm1032, %v975, -inf
        %v1055 = vrot.slane %v1054, 4
        %v1056 = vmax.f32 %v1054, %v1055
        %v1057 = vrot.slane %v1056, 2
        %v1058 = vmax.f32 %v1056, %v1057
        %v1059 = vrot.slane %v1058, 1
        %v1060 = vmax.f32 %v1058, %v1059
        %v1061 = vsel %vm1032, %v976, -inf
        %v1062 = vrot.slane %v1061, 4
        %v1063 = vmax.f32 %v1061, %v1062
        %v1064 = vrot.slane %v1063, 2
        %v1065 = vmax.f32 %v1063, %v1064
        %v1066 = vrot.slane %v1065, 1
        %v1067 = vmax.f32 %v1065, %v1066
        %v1068 = vsel %vm1032, %v977, -inf
        %v1069 = vrot.slane %v1068, 4
        %v1070 = vmax.f32 %v1068, %v1069
        %v1071 = vrot.slane %v1070, 2
        %v1072 = vmax.f32 %v1070, %v1071
        %v1073 = vrot.slane %v1072, 1
        %v1074 = vmax.f32 %v1072, %v1073
        %v1075 = vsel %vm1032, %v978, -inf
        %v1076 = vrot.slane %v1075, 4
        %v1077 = vmax.f32 %v1075, %v1076
        %v1078 = vrot.slane %v1077, 2
        %v1079 = vmax.f32 %v1077, %v1078
        %v1080 = vrot.slane %v1079, 1
        %v1081 = vmax.f32 %v1079, %v1080
        %v1082 = vsel %vm1032, %v979, -inf
        %v1083 = vrot.slane %v1082, 4
        %v1084 = vmax.f32 %v1082, %v1083
        %v1085 = vrot.slane %v1084, 2
        %v1086 = vmax.f32 %v1084, %v1085
        %v1087 = vrot.slane %v1086, 1
        %v1088 = vmax.f32 %v1086, %v1087
        %v1090 = vrot.slane %v1031, 1
        %v1091 = vrot.slane %v1031, 2
        %v1092 = vrot.slane %v1031, 3
        %v1093 = vrot.slane %v1031, 4
        %v1094 = vrot.slane %v1031, 5
        %v1095 = vrot.slane %v1031, 6
        %v1096 = vrot.slane %v1031, 7
        %v1105 = vmax.f32 %v1039, %v1031
        %v1106 = vmax.f32 %v1046, %v1090
        %v1107 = vmax.f32 %v1053, %v1091
        %v1108 = vmax.f32 %v1060, %v1092
        %v1109 = vmax.f32 %v1067, %v1093
        %v1110 = vmax.f32 %v1074, %v1094
        %v1111 = vmax.f32 %v1081, %v1095
        %v1112 = vmax.f32 %v1088, %v1096
        %v1113 = vlaneseq
        %v1114 = vshrl.u32 %v1113, 7
        %v1115 = vsub.s32 0, %v1114
        %v1116 = vrot.slane %v1105, %v1115
        %v1117 = vlaneseq
        %v1118 = vshrl.u32 %v1117, 7
        %v1119 = vsub.s32 0, %v1118
        %v1120 = vrot.slane %v1106, %v1119
        %v1121 = vlaneseq
        %v1122 = vshrl.u32 %v1121, 7
        %v1123 = vsub.s32 0, %v1122
        %v1124 = vrot.slane %v1107, %v1123
        %v1125 = vlaneseq
        %v1126 = vshrl.u32 %v1125, 7
        %v1127 = vsub.s32 0, %v1126
        %v1128 = vrot.slane %v1108, %v1127
        %v1129 = vlaneseq
        %v1130 = vshrl.u32 %v1129, 7
        %v1131 = vsub.s32 0, %v1130
        %v1132 = vrot.slane %v1109, %v1131
        %v1133 = vlaneseq
        %v1134 = vshrl.u32 %v1133, 7
        %v1135 = vsub.s32 0, %v1134
        %v1136 = vrot.slane %v1110, %v1135
        %v1137 = vlaneseq
        %v1138 = vshrl.u32 %v1137, 7
        %v1139 = vsub.s32 0, %v1138
        %v1140 = vrot.slane %v1111, %v1139
        %v1141 = vlaneseq
        %v1142 = vshrl.u32 %v1141, 7
        %v1143 = vsub.s32 0, %v1142
        %v1144 = vrot.slane %v1112, %v1143
        %v1145 = vsub.f32 %v972, %v1116
        %v1146 = vsub.f32 %v973, %v1120
        %v1147 = vsub.f32 %v974, %v1124
        %v1148 = vsub.f32 %v975, %v1128
        %v1149 = vsub.f32 %v976, %v1132
        %v1150 = vsub.f32 %v977, %v1136
        %v1151 = vsub.f32 %v978, %v1140
        %v1152 = vsub.f32 %v979, %v1144
        %v1153 = vmul.f32 %v1145, 1.442695
        %v1154 = vpow.pop %v1153
        %v1155 = vmul.f32 %v1146, 1.442695
        %v1156 = vpow.pop %v1155
        %v1157 = vmul.f32 %v1147, 1.442695
        %v1158 = vpow.pop %v1157
        %v1159 = vmul.f32 %v1148, 1.442695
        %v1160 = vpow.pop %v1159
        %v1161 = vmul.f32 %v1149, 1.442695
        %v1162 = vpow.pop %v1161
        %v1163 = vmul.f32 %v1150, 1.442695
        %v1164 = vpow.pop %v1163
        %v1165 = vmul.f32 %v1151, 1.442695
        %v1166 = vpow.pop %v1165
        %v1167 = vmul.f32 %v1152, 1.442695
        %v1168 = vpow.pop %v1167
        %v1177 = vrot.slane %v1106, 7
        %v1178 = vsel %vm581, %v1177, %v1105
        %v1179 = vrot.slane %v1107, 6
        %v1180 = vsel %vm584, %v1179, %v1178
        %v1181 = vrot.slane %v1108, 5
        %v1182 = vsel %vm587, %v1181, %v1180
        %v1183 = vrot.slane %v1109, 4
        %v1184 = vsel %vm590, %v1183, %v1182
        %v1185 = vrot.slane %v1110, 3
        %v1186 = vsel %vm593, %v1185, %v1184
        %v1187 = vrot.slane %v1111, 2
        %v1188 = vsel %vm596, %v1187, %v1186
        %v1189 = vrot.slane %v1112, 1
        %v1190 = vsel %vm599, %v1189, %v1188
        %v1192 = vsub.f32 %v1031, %v1190
        %v1193 = vmul.f32 %v1192, 1.442695
        %v1194 = vpow.pop %v1193
        %v1195 = vsel %vm1032, %v1154, 0.0
        %v1196 = vrot.slane %v1195, 4
        %v1197 = vadd.f32 %v1195, %v1196
        %v1198 = vrot.slane %v1197, 2
        %v1199 = vadd.f32 %v1197, %v1198
        %v1200 = vrot.slane %v1199, 1
        %v1201 = vadd.f32 %v1199, %v1200
        %v1202 = vsel %vm1032, %v1156, 0.0
        %v1203 = vrot.slane %v1202, 4
        %v1204 = vadd.f32 %v1202, %v1203
        %v1205 = vrot.slane %v1204, 2
        %v1206 = vadd.f32 %v1204, %v1205
        %v1207 = vrot.slane %v1206, 1
        %v1208 = vadd.f32 %v1206, %v1207
        %v1209 = vsel %vm1032, %v1158, 0.0
        %v1210 = vrot.slane %v1209, 4
        %v1211 = vadd.f32 %v1209, %v1210
        %v1212 = vrot.slane %v1211, 2
        %v1213 = vadd.f32 %v1211, %v1212
        %v1214 = vrot.slane %v1213, 1
        %v1215 = vadd.f32 %v1213, %v1214
        %v1216 = vsel %vm1032, %v1160, 0.0
        %v1217 = vrot.slane %v1216, 4
        %v1218 = vadd.f32 %v1216, %v1217
        %v1219 = vrot.slane %v1218, 2
        %v1220 = vadd.f32 %v1218, %v1219
        %v1221 = vrot.slane %v1220, 1
        %v1222 = vadd.f32 %v1220, %v1221
        %v1223 = vsel %vm1032, %v1162, 0.0
        %v1224 = vrot.slane %v1223, 4
        %v1225 = vadd.f32 %v1223, %v1224
        %v1226 = vrot.slane %v1225, 2
        %v1227 = vadd.f32 %v1225, %v1226
        %v1228 = vrot.slane %v1227, 1
        %v1229 = vadd.f32 %v1227, %v1228
        %v1230 = vsel %vm1032, %v1164, 0.0
        %v1231 = vrot.slane %v1230, 4
        %v1232 = vadd.f32 %v1230, %v1231
        %v1233 = vrot.slane %v1232, 2
        %v1234 = vadd.f32 %v1232, %v1233
        %v1235 = vrot.slane %v1234, 1
        %v1236 = vadd.f32 %v1234, %v1235
        %v1237 = vsel %vm1032, %v1166, 0.0
        %v1238 = vrot.slane %v1237, 4
        %v1239 = vadd.f32 %v1237, %v1238
        %v1240 = vrot.slane %v1239, 2
        %v1241 = vadd.f32 %v1239, %v1240
        %v1242 = vrot.slane %v1241, 1
        %v1243 = vadd.f32 %v1241, %v1242
        %v1244 = vsel %vm1032, %v1168, 0.0
        %v1245 = vrot.slane %v1244, 4
        %v1246 = vadd.f32 %v1244, %v1245
        %v1247 = vrot.slane %v1246, 2
        %v1248 = vadd.f32 %v1246, %v1247
        %v1249 = vrot.slane %v1248, 1
        %v1250 = vadd.f32 %v1248, %v1249
        %v1252 = vrot.slane %v1194, 1
        %v1253 = vrot.slane %v1194, 2
        %v1254 = vrot.slane %v1194, 3
        %v1255 = vrot.slane %v1194, 4
        %v1256 = vrot.slane %v1194, 5
        %v1257 = vrot.slane %v1194, 6
        %v1258 = vrot.slane %v1194, 7
        %v1267 = vadd.f32 %v1201, %v1194
        %v1268 = vadd.f32 %v1208, %v1252
        %v1269 = vadd.f32 %v1215, %v1253
        %v1270 = vadd.f32 %v1222, %v1254
        %v1271 = vadd.f32 %v1229, %v1255
        %v1272 = vadd.f32 %v1236, %v1256
        %v1273 = vadd.f32 %v1243, %v1257
        %v1274 = vadd.f32 %v1250, %v1258
        %v1275 = vrcp.pop %v1267
        %v1276 = vrcp.pop %v1268
        %v1277 = vrcp.pop %v1269
        %v1278 = vrcp.pop %v1270
        %v1279 = vrcp.pop %v1271
        %v1280 = vrcp.pop %v1272
        %v1281 = vrcp.pop %v1273
        %v1282 = vrcp.pop %v1274
        %v1283 = vpack.c.bf16 %v1156, %v1154
        %v1284 = vpack.c.bf16 %v1160, %v1158
        %v1285 = vpack.c.bf16 %v1164, %v1162
        %v1286 = vpack.c.bf16 %v1168, %v1166
        %v1287 = vld [vmem:[%s9] sm:$0x3]
        %v1289 = vsel %vm1032, %v1283, 0
        %v1292 = vsel %vm1032, %v1284, 0
        %v1295 = vsel %vm1032, %v1285, 0
        %v1298 = vsel %vm1032, %v1286, 0
        %vm1300 = vcmask 1041408
        %v1302 = vsel %vm1300, %v1287, 0
        %1304 = vmatprep.subr.bf16.mxu0 0
        %1305 = vmatpush1.bf16.msra.mxu0 0
        %1306 = vmatprep.subr.bf16.mxu0 0
        %1307 = vmatpush1.bf16.msra.mxu0 0
        %1308 = vmatprep.subr.bf16.mxu0 0
        %1309 = vmatpush1.bf16.msra.mxu0 0
        %1310 = vmatprep.subr.bf16.mxu0 0
        %1311 = vmatpush1.bf16.msra.mxu0 0
        %1312 = vmatprep.subr.bf16.mxu0 0
        %1313 = vmatpush1.bf16.msra.mxu0 0
        %1314 = vmatprep.subr.bf16.mxu0 0
        %1315 = vmatpush1.bf16.msra.mxu0 0
        %1316 = vmatprep.subr.bf16.mxu0 0
        %1317 = vmatpush1.bf16.msra.mxu0 0
        %1318 = vmatprep.subr.bf16.mxu0 0
        %1319 = vmatpush1.bf16.msra.mxu0 %v1302
        %1320 = vmatprep.subr.bf16.mxu0 0
        %1321 = vmatpush2.bf16.msra.mxu0 0
        %1322 = vmatprep.subr.bf16.mxu0 0
        %1323 = vmatpush2.bf16.msra.mxu0 0
        %1324 = vmatprep.subr.bf16.mxu0 0
        %1325 = vmatpush2.bf16.msra.mxu0 0
        %1326 = vmatprep.subr.bf16.mxu0 0
        %1327 = vmatpush2.bf16.msra.mxu0 0
        %1328 = vmatprep.subr.bf16.mxu0 0
        %1329 = vmatpush2.bf16.msra.mxu0 0
        %1330 = vmatprep.subr.bf16.mxu0 0
        %1331 = vmatpush2.bf16.msra.mxu0 0
        %1332 = vmatprep.subr.bf16.mxu0 0
        %1333 = vmatpush2.bf16.msra.mxu0 0
        %1334 = vmatprep.subr.bf16.mxu0 0
        %1335 = vmatpush2.bf16.msra.mxu0 0
        %1336 = vmatprep.mubr.bf16.mxu0 0
        %1337 = vmatmul.mubr.bf16.gmra.mxu0 %v1289
        %v1338 = vpop.f32.mrf.mxu0
        %v1339 = vadd.f32 0.0, %v1338
        %v1340 = vpop.f32.mrf.mxu0
        %v1341 = vpop.f32.mrf.mxu0
        %v1342 = vadd.f32 0.0, %v1341
        %v1343 = vpop.f32.mrf.mxu0
        %1344 = vmatprep.mubr.bf16.mxu0 0
        %1345 = vmatmul.mubr.bf16.gmra.mxu0 %v1292
        %v1346 = vpop.f32.mrf.mxu0
        %v1347 = vadd.f32 0.0, %v1346
        %v1348 = vpop.f32.mrf.mxu0
        %v1349 = vpop.f32.mrf.mxu0
        %v1350 = vadd.f32 0.0, %v1349
        %v1351 = vpop.f32.mrf.mxu0
        %1352 = vmatprep.mubr.bf16.mxu0 0
        %1353 = vmatmul.mubr.bf16.gmra.mxu0 %v1295
        %v1354 = vpop.f32.mrf.mxu0
        %v1355 = vadd.f32 0.0, %v1354
        %v1356 = vpop.f32.mrf.mxu0
        %v1357 = vpop.f32.mrf.mxu0
        %v1358 = vadd.f32 0.0, %v1357
        %v1359 = vpop.f32.mrf.mxu0
        %1360 = vmatprep.mubr.bf16.mxu0 0
        %1361 = vmatmul.mubr.bf16.gmra.mxu0 %v1298
        %v1362 = vpop.f32.mrf.mxu0
        %v1363 = vadd.f32 0.0, %v1362
        %v1364 = vpop.f32.mrf.mxu0
        %v1365 = vpop.f32.mrf.mxu0
        %v1366 = vadd.f32 0.0, %v1365
        %v1367 = vpop.f32.mrf.mxu0
        %1368 = vdwg.mxu0
        %1377 = vrot.lane.b32.xlu0 %v747, 96
        %v1378 = vpop.permute.xlu0 %1377
        %1379 = vrot.lane.b32.xlu0 %v750, 96
        %v1380 = vpop.permute.xlu0 %1379
        %1381 = vrot.lane.b32.xlu0 %v755, 96
        %v1382 = vpop.permute.xlu0 %1381
        %1383 = vrot.lane.b32.xlu0 %v758, 96
        %v1384 = vpop.permute.xlu0 %1383
        %1385 = vrot.lane.b32.xlu0 %v763, 96
        %v1386 = vpop.permute.xlu0 %1385
        %1387 = vrot.lane.b32.xlu0 %v766, 96
        %v1388 = vpop.permute.xlu0 %1387
        %1389 = vrot.lane.b32.xlu0 %v771, 96
        %v1390 = vpop.permute.xlu0 %1389
        %1391 = vrot.lane.b32.xlu0 %v774, 96
        %v1392 = vpop.permute.xlu0 %1391
        %v1401 = vmul.f32 %v1339, %v1378
        %v1402 = vmul.f32 %v1342, %v1380
        %v1403 = vmul.f32 %v1347, %v1382
        %v1404 = vmul.f32 %v1350, %v1384
        %v1405 = vmul.f32 %v1355, %v1386
        %v1406 = vmul.f32 %v1358, %v1388
        %v1407 = vmul.f32 %v1363, %v1390
        %v1408 = vmul.f32 %v1366, %v1392
        %v1409 = vsel %vm444, %v1401, 0.0
        %v1410 = vrot.slane %v1409, 4
        %v1411 = vadd.f32 %v1409, %v1410
        %v1412 = vrot.slane %v1411, 2
        %v1413 = vadd.f32 %v1411, %v1412
        %v1414 = vrot.slane %v1413, 1
        %v1415 = vadd.f32 %v1413, %v1414
        %v1416 = vsel %vm444, %v1402, 0.0
        %v1417 = vrot.slane %v1416, 4
        %v1418 = vadd.f32 %v1416, %v1417
        %v1419 = vrot.slane %v1418, 2
        %v1420 = vadd.f32 %v1418, %v1419
        %v1421 = vrot.slane %v1420, 1
        %v1422 = vadd.f32 %v1420, %v1421
        %v1423 = vsel %vm444, %v1403, 0.0
        %v1424 = vrot.slane %v1423, 4
        %v1425 = vadd.f32 %v1423, %v1424
        %v1426 = vrot.slane %v1425, 2
        %v1427 = vadd.f32 %v1425, %v1426
        %v1428 = vrot.slane %v1427, 1
        %v1429 = vadd.f32 %v1427, %v1428
        %v1430 = vsel %vm444, %v1404, 0.0
        %v1431 = vrot.slane %v1430, 4
        %v1432 = vadd.f32 %v1430, %v1431
        %v1433 = vrot.slane %v1432, 2
        %v1434 = vadd.f32 %v1432, %v1433
        %v1435 = vrot.slane %v1434, 1
        %v1436 = vadd.f32 %v1434, %v1435
        %v1437 = vsel %vm444, %v1405, 0.0
        %v1438 = vrot.slane %v1437, 4
        %v1439 = vadd.f32 %v1437, %v1438
        %v1440 = vrot.slane %v1439, 2
        %v1441 = vadd.f32 %v1439, %v1440
        %v1442 = vrot.slane %v1441, 1
        %v1443 = vadd.f32 %v1441, %v1442
        %v1444 = vsel %vm444, %v1406, 0.0
        %v1445 = vrot.slane %v1444, 4
        %v1446 = vadd.f32 %v1444, %v1445
        %v1447 = vrot.slane %v1446, 2
        %v1448 = vadd.f32 %v1446, %v1447
        %v1449 = vrot.slane %v1448, 1
        %v1450 = vadd.f32 %v1448, %v1449
        %v1451 = vsel %vm444, %v1407, 0.0
        %v1452 = vrot.slane %v1451, 4
        %v1453 = vadd.f32 %v1451, %v1452
        %v1454 = vrot.slane %v1453, 2
        %v1455 = vadd.f32 %v1453, %v1454
        %v1456 = vrot.slane %v1455, 1
        %v1457 = vadd.f32 %v1455, %v1456
        %v1458 = vsel %vm444, %v1408, 0.0
        %v1459 = vrot.slane %v1458, 4
        %v1460 = vadd.f32 %v1458, %v1459
        %v1461 = vrot.slane %v1460, 2
        %v1462 = vadd.f32 %v1460, %v1461
        %v1463 = vrot.slane %v1462, 1
        %v1464 = vadd.f32 %v1462, %v1463
        %v1465 = vpack.c.bf16 %v1194, %v1194
        %v1467 = vsel %vm1032, %v1465, 0
        %1469 = vmatprep.subr.bf16.mxu0 0
        %1470 = vmatpush1.bf16.msra.mxu0 0
        %1471 = vmatprep.subr.bf16.mxu0 0
        %1472 = vmatpush1.bf16.msra.mxu0 0
        %1473 = vmatprep.subr.bf16.mxu0 0
        %1474 = vmatpush1.bf16.msra.mxu0 0
        %1475 = vmatprep.subr.bf16.mxu0 0
        %1476 = vmatpush1.bf16.msra.mxu0 0
        %1477 = vmatprep.subr.bf16.mxu0 0
        %1478 = vmatpush1.bf16.msra.mxu0 0
        %1479 = vmatprep.subr.bf16.mxu0 0
        %1480 = vmatpush1.bf16.msra.mxu0 0
        %1481 = vmatprep.subr.bf16.mxu0 0
        %1482 = vmatpush1.bf16.msra.mxu0 0
        %1483 = vmatprep.subr.bf16.mxu0 0
        %1484 = vmatpush1.bf16.msra.mxu0 %v1302
        %1485 = vmatprep.subr.bf16.mxu0 0
        %1486 = vmatpush2.bf16.msra.mxu0 0
        %1487 = vmatprep.subr.bf16.mxu0 0
        %1488 = vmatpush2.bf16.msra.mxu0 0
        %1489 = vmatprep.subr.bf16.mxu0 0
        %1490 = vmatpush2.bf16.msra.mxu0 0
        %1491 = vmatprep.subr.bf16.mxu0 0
        %1492 = vmatpush2.bf16.msra.mxu0 0
        %1493 = vmatprep.subr.bf16.mxu0 0
        %1494 = vmatpush2.bf16.msra.mxu0 0
        %1495 = vmatprep.subr.bf16.mxu0 0
        %1496 = vmatpush2.bf16.msra.mxu0 0
        %1497 = vmatprep.subr.bf16.mxu0 0
        %1498 = vmatpush2.bf16.msra.mxu0 0
        %1499 = vmatprep.subr.bf16.mxu0 0
        %1500 = vmatpush2.bf16.msra.mxu0 0
        %1501 = vmatprep.mubr.bf16.mxu0 0
        %1502 = vmatmul.mubr.bf16.gmra.mxu0 %v1467
        %v1503 = vpop.f32.mrf.mxu0
        %v1504 = vadd.f32 0.0, %v1503
        %v1505 = vpop.f32.mrf.mxu0
        %v1506 = vpop.f32.mrf.mxu0
        %v1507 = vpop.f32.mrf.mxu0
        %1508 = vdwg.mxu0
        %v1509 = vpack.c.bf16 %v1275, %v1275
        %v1510 = vpack.c.bf16 %v1276, %v1276
        %v1511 = vpack.c.bf16 %v1277, %v1277
        %v1512 = vpack.c.bf16 %v1278, %v1278
        %v1513 = vpack.c.bf16 %v1279, %v1279
        %v1514 = vpack.c.bf16 %v1280, %v1280
        %v1515 = vpack.c.bf16 %v1281, %v1281
        %v1516 = vpack.c.bf16 %v1282, %v1282
        %v1525 = vunpack.c.l.b16 %v1509
        %v1526 = vunpack.c.l.b16 %v1510
        %v1527 = vunpack.c.l.b16 %v1511
        %v1528 = vunpack.c.l.b16 %v1512
        %v1529 = vunpack.c.l.b16 %v1513
        %v1530 = vunpack.c.l.b16 %v1514
        %v1531 = vunpack.c.l.b16 %v1515
        %v1532 = vunpack.c.l.b16 %v1516
        %v1533 = vrot.slane %v1526, 7
        %v1534 = vsel %vm581, %v1533, %v1525
        %v1535 = vrot.slane %v1527, 6
        %v1536 = vsel %vm584, %v1535, %v1534
        %v1537 = vrot.slane %v1528, 5
        %v1538 = vsel %vm587, %v1537, %v1536
        %v1539 = vrot.slane %v1529, 4
        %v1540 = vsel %vm590, %v1539, %v1538
        %v1541 = vrot.slane %v1530, 3
        %v1542 = vsel %vm593, %v1541, %v1540
        %v1543 = vrot.slane %v1531, 2
        %v1544 = vsel %vm596, %v1543, %v1542
        %v1545 = vrot.slane %v1532, 1
        %v1546 = vsel %vm599, %v1545, %v1544
        %v1547 = vpack.c.b16 %v1546, %v1546
        %v1549 = vsel %vm1032, %v1547, 0
        %1551 = vmatprep.subr.bf16.mxu0 0
        %1552 = vmatpush1.bf16.msra.mxu0 0
        %1553 = vmatprep.subr.bf16.mxu0 0
        %1554 = vmatpush1.bf16.msra.mxu0 0
        %1555 = vmatprep.subr.bf16.mxu0 0
        %1556 = vmatpush1.bf16.msra.mxu0 0
        %1557 = vmatprep.subr.bf16.mxu0 0
        %1558 = vmatpush1.bf16.msra.mxu0 0
        %1559 = vmatprep.subr.bf16.mxu0 0
        %1560 = vmatpush1.bf16.msra.mxu0 0
        %1561 = vmatprep.subr.bf16.mxu0 0
        %1562 = vmatpush1.bf16.msra.mxu0 0
        %1563 = vmatprep.subr.bf16.mxu0 0
        %1564 = vmatpush1.bf16.msra.mxu0 0
        %1565 = vmatprep.subr.bf16.mxu0 0
        %1566 = vmatpush1.bf16.msra.mxu0 %v1302
        %1567 = vmatprep.subr.bf16.mxu0 0
        %1568 = vmatpush2.bf16.msra.mxu0 0
        %1569 = vmatprep.subr.bf16.mxu0 0
        %1570 = vmatpush2.bf16.msra.mxu0 0
        %1571 = vmatprep.subr.bf16.mxu0 0
        %1572 = vmatpush2.bf16.msra.mxu0 0
        %1573 = vmatprep.subr.bf16.mxu0 0
        %1574 = vmatpush2.bf16.msra.mxu0 0
        %1575 = vmatprep.subr.bf16.mxu0 0
        %1576 = vmatpush2.bf16.msra.mxu0 0
        %1577 = vmatprep.subr.bf16.mxu0 0
        %1578 = vmatpush2.bf16.msra.mxu0 0
        %1579 = vmatprep.subr.bf16.mxu0 0
        %1580 = vmatpush2.bf16.msra.mxu0 0
        %1581 = vmatprep.subr.bf16.mxu0 0
        %1582 = vmatpush2.bf16.msra.mxu0 0
        %1583 = vmatprep.mubr.bf16.mxu0 0
        %1584 = vmatmul.mubr.bf16.gmra.mxu0 %v1549
        %v1585 = vpop.f32.mrf.mxu0
        %v1586 = vadd.f32 0.0, %v1585
        %v1587 = vpop.f32.mrf.mxu0
        %v1588 = vpop.f32.mrf.mxu0
        %v1589 = vpop.f32.mrf.mxu0
        %1590 = vdwg.mxu0
        %1591 = vrot.lane.b32.xlu0 %v652, 64
        %v1592 = vpop.permute.xlu0 %1591
        %v1594 = vmul.f32 %v1504, %v1592
        %v1596 = vrot.slane %v1594, 1
        %v1597 = vrot.slane %v1594, 2
        %v1598 = vrot.slane %v1594, 3
        %v1599 = vrot.slane %v1594, 4
        %v1600 = vrot.slane %v1594, 5
        %v1601 = vrot.slane %v1594, 6
        %v1602 = vrot.slane %v1594, 7
        %v1611 = vadd.f32 %v1415, %v1594
        %v1612 = vadd.f32 %v1422, %v1596
        %v1613 = vadd.f32 %v1429, %v1597
        %v1614 = vadd.f32 %v1436, %v1598
        %v1615 = vadd.f32 %v1443, %v1599
        %v1616 = vadd.f32 %v1450, %v1600
        %v1617 = vadd.f32 %v1457, %v1601
        %v1618 = vadd.f32 %v1464, %v1602
        %v1620 = vrot.slane %v1586, 1
        %v1621 = vrot.slane %v1586, 2
        %v1622 = vrot.slane %v1586, 3
        %v1623 = vrot.slane %v1586, 4
        %v1624 = vrot.slane %v1586, 5
        %v1625 = vrot.slane %v1586, 6
        %v1626 = vrot.slane %v1586, 7
        %v1635 = vmul.f32 %v1611, %v1586
        %v1636 = vmul.f32 %v1612, %v1620
        %v1637 = vmul.f32 %v1613, %v1621
        %v1638 = vmul.f32 %v1614, %v1622
        %v1639 = vmul.f32 %v1615, %v1623
        %v1640 = vmul.f32 %v1616, %v1624
        %v1641 = vmul.f32 %v1617, %v1625
        %v1642 = vmul.f32 %v1618, %v1626
        %v1643 = vpack.c.bf16 %v1635, %v1635
        %v1644 = vpack.c.bf16 %v1636, %v1636
        %v1645 = vpack.c.bf16 %v1637, %v1637
        %v1646 = vpack.c.bf16 %v1638, %v1638
        %v1647 = vpack.c.bf16 %v1639, %v1639
        %v1648 = vpack.c.bf16 %v1640, %v1640
        %v1649 = vpack.c.bf16 %v1641, %v1641
        %v1650 = vpack.c.bf16 %v1642, %v1642
        %v1651 = vld [vmem:[#allocation8] sm:$0xf]
        %v1652 = vld [vmem:[#allocation8 + $0x4] sm:$0xf]
        %v1653 = vld [vmem:[#allocation8 + $0x8] sm:$0xf]
        %v1654 = vld [vmem:[#allocation8 + $0xc] sm:$0xf]
        %v1655 = vld [vmem:[%s7] sm:$0x1]
        %v1657 = vlaneseq
        %v1658 = vshrl.u32 %v1657, 7
        %v1659 = vsub.s32 0, %v1658
        %v1660 = vrot.slane %v1655, %v1659
        %v1670 = vunpack.c.l.b16 %v1643
        %v1671 = vunpack.c.l.b16 %v1644
        %v1672 = vunpack.c.l.b16 %v1645
        %v1673 = vunpack.c.l.b16 %v1646
        %v1674 = vunpack.c.l.b16 %v1647
        %v1675 = vunpack.c.l.b16 %v1648
        %v1676 = vunpack.c.l.b16 %v1649
        %v1677 = vunpack.c.l.b16 %v1650
        %v1678 = vrot.slane %v1671, 7
        %v1679 = vsel %vm581, %v1678, %v1670
        %v1680 = vrot.slane %v1672, 6
        %v1681 = vsel %vm584, %v1680, %v1679
        %v1682 = vrot.slane %v1673, 5
        %v1683 = vsel %vm587, %v1682, %v1681
        %v1684 = vrot.slane %v1674, 4
        %v1685 = vsel %vm590, %v1684, %v1683
        %v1686 = vrot.slane %v1675, 3
        %v1687 = vsel %vm593, %v1686, %v1685
        %v1688 = vrot.slane %v1676, 2
        %v1689 = vsel %vm596, %v1688, %v1687
        %v1690 = vrot.slane %v1677, 1
        %v1691 = vsel %vm599, %v1690, %v1689
        %v1692 = vpack.c.b16 %v1691, %v1691
        %v1697 = vunpack.c.l.b16 %v1651
        %v1698 = vunpack.c.l.b16 %v1652
        %v1699 = vunpack.c.l.b16 %v1653
        %v1700 = vunpack.c.l.b16 %v1654
        %v1701 = vpack.c.b16 %v1698, %v1697
        %v1702 = vpack.c.b16 %v1700, %v1699
        %v1706 = vsel %vm444, %v1692, 0
        %1708 = vmatprep.subr.bf16.mxu0 0
        %1709 = vmatpush1.bf16.msra.mxu0 0
        %1710 = vmatprep.subr.bf16.mxu0 0
        %1711 = vmatpush1.bf16.msra.mxu0 0
        %1712 = vmatprep.subr.bf16.mxu0 0
        %1713 = vmatpush1.bf16.msra.mxu0 0
        %1714 = vmatprep.subr.bf16.mxu0 0
        %1715 = vmatpush1.bf16.msra.mxu0 0
        %1716 = vmatprep.subr.bf16.mxu0 0
        %1717 = vmatpush1.bf16.msra.mxu0 0
        %1718 = vmatprep.subr.bf16.mxu0 0
        %1719 = vmatpush1.bf16.msra.mxu0 0
        %1720 = vmatprep.subr.bf16.mxu0 0
        %1721 = vmatpush1.bf16.msra.mxu0 %v1702
        %1722 = vmatprep.subr.bf16.mxu0 0
        %1723 = vmatpush1.bf16.msra.mxu0 %v1701
        %1724 = vmatprep.subr.bf16.mxu0 0
        %1725 = vmatpush2.bf16.msra.mxu0 0
        %1726 = vmatprep.subr.bf16.mxu0 0
        %1727 = vmatpush2.bf16.msra.mxu0 0
        %1728 = vmatprep.subr.bf16.mxu0 0
        %1729 = vmatpush2.bf16.msra.mxu0 0
        %1730 = vmatprep.subr.bf16.mxu0 0
        %1731 = vmatpush2.bf16.msra.mxu0 0
        %1732 = vmatprep.subr.bf16.mxu0 0
        %1733 = vmatpush2.bf16.msra.mxu0 0
        %1734 = vmatprep.subr.bf16.mxu0 0
        %1735 = vmatpush2.bf16.msra.mxu0 0
        %1736 = vmatprep.subr.bf16.mxu0 0
        %1737 = vmatpush2.bf16.msra.mxu0 0
        %1738 = vmatprep.subr.bf16.mxu0 0
        %1739 = vmatpush2.bf16.msra.mxu0 0
        %1740 = vmatprep.mubr.bf16.mxu0 0
        %1741 = vmatmul.mubr.bf16.gmra.mxu0 %v1706
        %v1742 = vpop.f32.mrf.mxu0
        %v1743 = vadd.f32 %v1660, %v1742
        %v1744 = vpop.f32.mrf.mxu0
        %v1745 = vpop.f32.mrf.mxu0
        %v1746 = vpop.f32.mrf.mxu0
        %1747 = vdwg.mxu0
        %1748 = vst [vmem:[%s421] sm:$0xff] %v1743
        %s1749 = sand.u32 %s252, 1
        %s1750 = scalar_lea.sflag [#allocation4], %s1749
        %s1751 = sand.u32 %s252, 1
        %s1752 = smul.addr %s1751, 8
        %s1753 = scalar_lea.vmem [#allocation10], %s1752
        // Predicated region
        $region77: #{tpu_custom_call.1} parent=59 // pred_check
          %p1754 = pneg %p262
        $region78: #{tpu_custom_call.1} parent=59 // pred_check_branch
          %1756 = sbr.rel (%p1754) target = $region80
        $region79: #{tpu_custom_call.1} parent=59 // pred_region
          %s1758 = ssub.s32 128, 128
          %1759 = vsyncadd %s1750, %s1758
          %s1760 = smul.addr %s29, 128
          %s1761 = scalar_lea.hbm %s10, %s1760
          %s1763 = sshll.u32 %s1753, 4
          %s1764 = int_to_ptr.vmem [resolvable:$true] %s1763
          %1766 = dma.vmem_to_hbm [thread:$0]  %s1764, 128, %s1761, %s1750
        $region80: #{tpu_custom_call.1} parent=59 // pred_fallthru
          _
      $region60: #{tpu_custom_call.1} parent=5 // pred_fallthru
        _
      %p1767 = scmp.le.s32.totalorder 2, %s24
      // Predicated region
      $region81: #{tpu_custom_call.1} parent=5 // pred_check
        %p1768 = pneg %p1767
      $region82: #{tpu_custom_call.1} parent=5 // pred_check_branch
        %1770 = sbr.rel (%p1768) target = $region84
      $region83: #{tpu_custom_call.1} parent=5 // pred_region
        %s1771 = ssub.s32 %s24, 2
        // Predicated region
        $region85: #{tpu_custom_call.1} parent=83 // pred_check
          %p1772 = pneg %p268
        $region86: #{tpu_custom_call.1} parent=83 // pred_check_branch
          %1774 = sbr.rel (%p1772) target = $region88
        $region87: #{tpu_custom_call.1} parent=83 // pred_region
          %s1775 = sand.u32 %s253, 1
          %s1776 = scalar_lea.sflag [#allocation4], %s1775
          %s1777 = sand.u32 %s253, 1
          %s1778 = smul.addr %s1777, 8
          %s1779 = scalar_lea.vmem [#allocation10], %s1778
          %1780 = dma.done %s1776, 128
        $region88: #{tpu_custom_call.1} parent=83 // pred_fallthru
          _
      $region84: #{tpu_custom_call.1} parent=5 // pred_fallthru
        _
    $region6: #{tpu_custom_call.1} parent=1 // loop_footer
      %s28 = sadd.s32 1, %s24
    $region7: #{tpu_custom_call.1} parent=1 // loop_footer_branch
      %23 = sbr.rel target = $region3
    $region8: #{tpu_custom_call.1} parent=1 // loop_exit
      _
    %1781 = vsyncpa [#allocation3], 1
    %s1782 = scalar_lea.sflag [#allocation3], 1
    %1783 = vsyncpa %s1782, 1
    %1784 = vsyncpa [#allocation6], 1
    %1785 = vsyncpa [#allocation9], 1
    %1786 = vsyncpa [#allocation4], 1
    %s1787 = scalar_lea.sflag [#allocation4], 1
    %1788 = vsyncpa %s1787, 1

</llo_original>
